<compile_context>
chip_gen: v6e
topology: v6e:2x2x1
jax: 0.10.0
libtpu: 0.0.40
codegen_flags: <defaults>
</compile_context>

<pallas_src>
import functools

import jax
import jax.numpy as jnp
import numpy as np
from jax.experimental import pallas as pl
from jax.experimental.pallas import tpu as pltpu


def _layer_norm(y, gamma, beta, eps=1e-5):
    mu = jnp.mean(y, axis=-1, keepdims=True)
    d = y - mu
    var = jnp.mean(d * d, axis=-1, keepdims=True)
    return d * jax.lax.rsqrt(var + eps) * gamma + beta


def _pad_axis(a, mult, axis):
    pad = (-a.shape[axis]) % mult
    if pad == 0:
        return a
    widths = [(0, 0)] * a.ndim
    widths[axis] = (0, pad)
    return jnp.pad(a, widths)


def _encoder_kernel(h_in_ref, wqkv_ref, wo_ref, w1_ref, w2_ref,
                    bqkv_ref, b1_ref, vecs_ref,
                    out_ref, h_ref, ctx_ref, *, n_heads, n_layers):
    f32, bf16 = jnp.float32, jnp.bfloat16
    bb, S, D = h_in_ref.shape
    hd = D // n_heads
    R = bb * S
    layer = pl.program_id(1)

    # Load the residual stream into the VMEM scratch at the first layer step of this batch block.
    @pl.when(layer == 0)
    def _init_residual():
        h_ref[...] = h_in_ref[...].reshape(R, D)

    h = h_ref[...]                        # (R, D) f32 residual stream

    wqkv = wqkv_ref[0]                    # (D, 3D) bf16 (Q scale pre-folded)
    wo = wo_ref[0]                        # (D, D)  bf16
    w1 = w1_ref[0]                        # (D, Fp) bf16
    w2 = w2_ref[0]                        # (Fp, D) bf16
    vecs = vecs_ref[0]                    # (6, D)  f32: [bo, ln1_g, ln1_b, b2, ln2_g, ln2_b]
    bo, ln1_g, ln1_b = vecs[0:1], vecs[1:2], vecs[2:3]
    b2, ln2_g, ln2_b = vecs[3:4], vecs[4:5], vecs[5:6]

    # ---- self attention (fused QKV matmul over all bb*S tokens; bf16 cast hoisted) ----
    qkv = jnp.dot(h.astype(bf16), wqkv, preferred_element_type=f32) + bqkv_ref[0]   # (R, 3D)
    qkv = qkv.astype(bf16).reshape(bb, S, 3 * D)
    # TODO(synk): for long sequences switch to a flash-style online-softmax over K/V tiles
    # instead of materializing the (S, S) score matrix per head.
    for hi in range(n_heads):
        lo = hi * hd
        q_h = qkv[:, :, lo:lo + hd]                       # scale already folded into wqkv
        k_h = qkv[:, :, D + lo:D + lo + hd]
        v_h = qkv[:, :, 2 * D + lo:2 * D + lo + hd]
        s = jnp.einsum("bqd,bkd->bqk", q_h, k_h, preferred_element_type=f32)   # (bb,S,S)
        s = s - jnp.max(s, axis=-1, keepdims=True)
        p = jnp.exp(s)
        p = p * pl.reciprocal(jnp.sum(p, axis=-1, keepdims=True), approx=True)
        ctx = jnp.einsum("bqk,bkd->bqd", p.astype(bf16), v_h,
                         preferred_element_type=f32)                            # (bb,S,hd)
        # Per-head context goes into a contiguous VMEM scratch (bounds the per-head f32 live range).
        ctx_ref[:, lo:lo + hd] = ctx.reshape(R, hd).astype(bf16)

    # Single attention-output GEMM over the full contraction depth D.
    attn = jnp.dot(ctx_ref[...], wo, preferred_element_type=f32) + bo
    # TODO(synk): dropout is identity here (nn.Dropout eval-mode semantics).
    h = _layer_norm(h + attn, ln1_g, ln1_b)

    # ---- feed forward (ReLU, default TransformerEncoderLayer activation) ----
    ff = jnp.dot(h.astype(bf16), w1, preferred_element_type=f32) + b1_ref[0]
    ff = jnp.maximum(ff, 0.0)
    ff = jnp.dot(ff.astype(bf16), w2, preferred_element_type=f32) + b2
    h = _layer_norm(h + ff, ln2_g, ln2_b)

    h_ref[...] = h

    # ---- last-token hidden state out, after the last layer ----
    @pl.when(layer == n_layers - 1)
    def _store_last_token():
        out_ref[...] = h.reshape(bb, S, D)[:, S - 1, :].reshape(1, bb, D)


def prepare_params(params, n_heads, *, param_dtype=jnp.bfloat16):
    """Fold 1/sqrt(head_dim) into the Q projection, zero-pad d_ff to lane width 128, cast matmul
    weights to bf16 (f32 accumulation), and pack the small per-layer vectors into one array."""
    L, D, _ = params["wqkv"].shape
    hd = D // n_heads
    scale = 1.0 / float(np.sqrt(hd))
    qkv_scale = jnp.concatenate([jnp.full((D,), scale, jnp.float32),
                                 jnp.ones((2 * D,), jnp.float32)])
    # TODO(synk): padding d_model itself to 128 needs masked LayerNorm stats; real configs
    # use d_model % 128 == 0 so it is left unpadded here.
    vecs = jnp.concatenate([params["bo"], params["ln1_g"], params["ln1_b"],
                            params["b2"], params["ln2_g"], params["ln2_b"]], axis=1)  # (L, 6, D)
    return {
        "wqkv": (params["wqkv"] * qkv_scale).astype(param_dtype),
        "bqkv": params["bqkv"] * qkv_scale,
        "wo":   params["wo"].astype(param_dtype),
        "w1":   _pad_axis(params["w1"], 128, 2).astype(param_dtype),
        "b1":   _pad_axis(params["b1"], 128, 2),
        "w2":   _pad_axis(params["w2"], 128, 1).astype(param_dtype),
        "vecs": vecs,
    }


def _vmem_capacity_bytes(default=64 * 2 ** 20):
    try:
        info_fn = getattr(pltpu, "get_tpu_info", None)
        if info_fn is not None:
            cap = getattr(info_fn(), "vmem_capacity_bytes", None)
            if cap:
                return int(cap)
    except Exception:
        pass
    return default


def _num_tensorcores():
    try:
        d = jax.devices()[0]
        for attr in ("num_cores", "core_count"):
            v = getattr(d, attr, None)
            if isinstance(v, int) and v > 0:
                return v
    except Exception:
        pass
    return 1


def transformer_forward(x, params, n_heads, *, param_dtype=jnp.bfloat16, num_batch_blocks=None):
    """Pallas forward. x: (B, S, input_dim) f32 -> (B, output_dim) f32."""
    B, S, _ = x.shape
    L, D, _ = params["wqkv"].shape
    assert D % n_heads == 0, "d_model must be divisible by n_heads"

    prepped = prepare_params(params, n_heads, param_dtype=param_dtype)
    Fp = prepped["w1"].shape[2]

    # Input projection as a plain XLA GEMM (kept out of the kernel; frees VMEM / per-step DMAs).
    h0 = (jnp.einsum("bsi,id->bsd", x, params["w_in"], precision="highest")
          + params["b_in"][0]).astype(jnp.float32)

    # Batch-block count: 1 unless the chip has >=2 TensorCores AND each block keeps R >= 256.
    if num_batch_blocks is not None:
        nb = int(num_batch_blocks)
    else:
        nb = 1
        if _num_tensorcores() >= 2 and B % 2 == 0 and (B // 2) * S >= 256:
            nb = 2
    if B % nb != 0:
        nb = 1
    bb = B // nb

    kernel = functools.partial(_encoder_kernel, n_heads=n_heads, n_layers=L)

    in_specs = [
        pl.BlockSpec((bb, S, D), lambda b, l: (b, 0, 0)),        # h0 (DMA'd once per batch block)
        pl.BlockSpec((1, D, 3 * D), lambda b, l: (l, 0, 0)),     # wqkv (streamed per layer)
        pl.BlockSpec((1, D, D), lambda b, l: (l, 0, 0)),         # wo
        pl.BlockSpec((1, D, Fp), lambda b, l: (l, 0, 0)),        # w1
        pl.BlockSpec((1, Fp, D), lambda b, l: (l, 0, 0)),        # w2
        pl.BlockSpec((1, 1, 3 * D), lambda b, l: (l, 0, 0)),     # bqkv
        pl.BlockSpec((1, 1, Fp), lambda b, l: (l, 0, 0)),        # b1
        pl.BlockSpec((1, 6, D), lambda b, l: (l, 0, 0)),         # packed per-layer vectors
    ]
    out_specs = pl.BlockSpec((1, bb, D), lambda b, l: (b, 0, 0))

    # VMEM budget: double-buffered per-layer weights + batch-block input + activations, capped by
    # the device's actual VMEM capacity (128 MiB on v5e/v6e, 64 MiB/TC on v7x) with headroom.
    w_isize = prepped["wqkv"].dtype.itemsize
    per_layer_bytes = ((3 * D * D + D * D + D * Fp + Fp * D) * w_isize
                       + 4 * (3 * D + Fp + 6 * D))
    h_in_bytes = 4 * bb * S * D
    act_bytes = 4 * bb * S * (8 * D + Fp) + 4 * bb * n_heads * S * S + 4 * bb * D
    needed = 2 * per_layer_bytes + 2 * h_in_bytes + act_bytes
    vmem_cap = _vmem_capacity_bytes()
    vmem_limit_bytes = int(min(max(int(needed * 1.25) + (2 << 20), 32 * 2 ** 20),
                               int(0.9 * vmem_cap)))
    # TODO(synk): for very large d_ff on v7x (64 MiB VMEM) add a d_ff-tiling grid axis for w1/w2.

    h_last = pl.pallas_call(
        kernel,
        out_shape=jax.ShapeDtypeStruct((nb, bb, D), jnp.float32),
        grid=(nb, L),
        in_specs=in_specs,
        out_specs=out_specs,
        scratch_shapes=[pltpu.VMEM((bb * S, D), jnp.float32),    # residual stream (carried over layers)
                        pltpu.VMEM((bb * S, D), jnp.bfloat16)],  # per-head context, head-major on lanes
        compiler_params=pltpu.CompilerParams(
            dimension_semantics=("parallel", "arbitrary"),
            vmem_limit_bytes=vmem_limit_bytes),
    )(h0,
      prepped["wqkv"], prepped["wo"], prepped["w1"], prepped["w2"],
      prepped["bqkv"], prepped["b1"], prepped["vecs"])

    # Output projection as a plain XLA GEMM on the last-token hidden states.
    h_last = h_last.reshape(B, D)
    return (jnp.einsum("bd,do->bo", h_last, params["w_out"], precision="highest")
            + params["b_out"][0])


def init_params(key, input_dim, d_model, n_layers, d_ff, output_dim):
    ks = jax.random.split(key, 12)
    s = 0.05
    f32 = jnp.float32
    return {
        "w_in": s * jax.random.normal(ks[0], (input_dim, d_model), f32),
        "b_in": s * jax.random.normal(ks[1], (1, d_model), f32),
        "wqkv": s * jax.random.normal(ks[2], (n_layers, d_model, 3 * d_model), f32),
        "bqkv": s * jax.random.normal(ks[3], (n_layers, 1, 3 * d_model), f32),
        "wo":   s * jax.random.normal(ks[4], (n_layers, d_model, d_model), f32),
        "bo":   s * jax.random.normal(ks[5], (n_layers, 1, d_model), f32),
        "ln1_g": jnp.ones((n_layers, 1, d_model), f32),
        "ln1_b": jnp.zeros((n_layers, 1, d_model), f32),
        "w1":   s * jax.random.normal(ks[6], (n_layers, d_model, d_ff), f32),
        "b1":   s * jax.random.normal(ks[7], (n_layers, 1, d_ff), f32),
        "w2":   s * jax.random.normal(ks[8], (n_layers, d_ff, d_model), f32),
        "b2":   s * jax.random.normal(ks[9], (n_layers, 1, d_model), f32),
        "ln2_g": jnp.ones((n_layers, 1, d_model), f32),
        "ln2_b": jnp.zeros((n_layers, 1, d_model), f32),
        "w_out": s * jax.random.normal(ks[10], (d_model, output_dim), f32),
        "b_out": s * jax.random.normal(ks[11], (1, output_dim), f32),
    }


def reference_forward(x, params, n_heads):
    """Pure-JAX f32 reference mirroring PyTorch TransformerEncoder (post-norm, relu, eval)."""
    B, S, _ = x.shape
    L, D, _ = params["wqkv"].shape
    hd = D // n_heads
    scale = 1.0 / np.sqrt(hd)
    h = jnp.einsum("bsi,id->bsd", x, params["w_in"],
                   precision="highest") + params["b_in"][0]
    for l in range(L):
        qkv = jnp.einsum("bsd,de->bse", h, params["wqkv"][l],
                         precision="highest") + params["bqkv"][l][0]
        q, k, v = qkv[..., :D], qkv[..., D:2 * D], qkv[..., 2 * D:]
        q = q.reshape(B, S, n_heads, hd) * scale
        k = k.reshape(B, S, n_heads, hd)
        v = v.reshape(B, S, n_heads, hd)
        sc = jnp.einsum("bqhd,bkhd->bhqk", q, k, precision="highest")
        p = jax.nn.softmax(sc, axis=-1)
        attn = jnp.einsum("bhqk,bkhd->bqhd", p, v, precision="highest").reshape(B, S, D)
        attn = jnp.einsum("bsd,de->bse", attn, params["wo"][l],
                          precision="highest") + params["bo"][l][0]
        h = _layer_norm(h + attn, params["ln1_g"][l][0], params["ln1_b"][l][0])
        ff = jnp.einsum("bsd,df->bsf", h, params["w1"][l],
                        precision="highest") + params["b1"][l][0]
        ff = jax.nn.relu(ff)
        ff = jnp.einsum("bsf,fd->bsd", ff, params["w2"][l],
                        precision="highest") + params["b2"][l][0]
        h = _layer_norm(h + ff, params["ln2_g"][l][0], params["ln2_b"][l][0])
    last = h[:, -1, :]
    return jnp.einsum("bd,do->bo", last, params["w_out"],
                      precision="highest") + params["b_out"][0]


if __name__ == "__main__":
    batch, seq = 2, 8
    input_dim, d_model, n_heads, n_layers, d_ff, output_dim = 16, 32, 4, 2, 64, 4

    key = jax.random.PRNGKey(0)
    kx, kp = jax.random.split(key)
    x = jax.random.normal(kx, (batch, seq, input_dim), jnp.float32)
    params = init_params(kp, input_dim, d_model, n_layers, d_ff, output_dim)

    out = transformer_forward(x, params, n_heads)
    out = jax.block_until_ready(out)

    ref = jax.block_until_ready(reference_forward(x, params, n_heads))
    assert out.shape == (batch, output_dim)
    # bf16 matmul operands with f32 accumulation (+ approx softmax reciprocal) -> relaxed tolerance.
    np.testing.assert_allclose(np.asarray(out), np.asarray(ref), atol=2e-2, rtol=2e-2)

    print("KERNEL_OK")
</pallas_src>

<mosaic_0001>
module attributes {stable_mosaic.version = 11 : i64} {
  func.func @_encoder_kernel(%arg0: i32, %arg1: i32, %arg2: memref<2x8x32xf32, #tpu.memory_space<vmem>>, %arg3: memref<1x32x96xbf16, #tpu.memory_space<vmem>>, %arg4: memref<1x32x32xbf16, #tpu.memory_space<vmem>>, %arg5: memref<1x32x128xbf16, #tpu.memory_space<vmem>>, %arg6: memref<1x128x32xbf16, #tpu.memory_space<vmem>>, %arg7: memref<1x1x96xf32, #tpu.memory_space<vmem>>, %arg8: memref<1x1x128xf32, #tpu.memory_space<vmem>>, %arg9: memref<1x6x32xf32, #tpu.memory_space<vmem>>, %arg10: memref<1x2x32xf32, #tpu.memory_space<vmem>>, %arg11: memref<16x32xf32, #tpu.memory_space<vmem>>, %arg12: memref<16x32xbf16, #tpu.memory_space<vmem>>) attributes {dimension_semantics = [#tpu.dimension_semantics<parallel>, #tpu.dimension_semantics<arbitrary>], iteration_bounds = array<i64: 1, 2>, scalar_prefetch = 0 : i64, scratch_operands = 2 : i64, tpu.core_type = #tpu.core_type<tc>, window_params = [{transform_indices = @transform_0, window_bounds = array<i64: 2, 8, 32>}, {transform_indices = @transform_1, window_bounds = array<i64: 1, 32, 96>}, {transform_indices = @transform_2, window_bounds = array<i64: 1, 32, 32>}, {transform_indices = @transform_3, window_bounds = array<i64: 1, 32, 128>}, {transform_indices = @transform_4, window_bounds = array<i64: 1, 128, 32>}, {transform_indices = @transform_5, window_bounds = array<i64: 1, 1, 96>}, {transform_indices = @transform_6, window_bounds = array<i64: 1, 1, 128>}, {transform_indices = @transform_7, window_bounds = array<i64: 1, 6, 32>}, {transform_indices = @transform_8, window_bounds = array<i64: 1, 2, 32>}]} {
    %c0_i32 = arith.constant 0 : i32
    %0 = arith.cmpi eq, %arg1, %c0_i32 : i32
    %1 = arith.extui %0 : i1 to i32
    %c0_i32_0 = arith.constant 0 : i32
    %2 = arith.cmpi ne, %1, %c0_i32_0 : i32
    scf.if %2 {
      %c0_63 = arith.constant 0 : index
      %c0_64 = arith.constant 0 : index
      %c0_65 = arith.constant 0 : index
      %166 = vector.load %arg2[%c0_63, %c0_64, %c0_65] : memref<2x8x32xf32, #tpu.memory_space<vmem>>, vector<2x8x32xf32>
      %167 = vector.shape_cast %166 : vector<2x8x32xf32> to vector<16x32xf32>
      %c0_66 = arith.constant 0 : index
      %c0_67 = arith.constant 0 : index
      %168 = vector.load %arg11[%c0_66, %c0_67] : memref<16x32xf32, #tpu.memory_space<vmem>>, vector<16x32xf32>
      tpu.vector_store %arg11[%c0_66, %c0_67], %167 {strides = array<i32>} : memref<16x32xf32, #tpu.memory_space<vmem>>, vector<16x32xf32>,
    } else {
    }
    %c0 = arith.constant 0 : index
    %c0_1 = arith.constant 0 : index
    %3 = vector.load %arg11[%c0, %c0_1] : memref<16x32xf32, #tpu.memory_space<vmem>>, vector<16x32xf32>
    %c0_2 = arith.constant 0 : index
    %c0_3 = arith.constant 0 : index
    %c0_4 = arith.constant 0 : index
    %4 = vector.load %arg3[%c0_2, %c0_3, %c0_4] : memref<1x32x96xbf16, #tpu.memory_space<vmem>>, vector<1x32x96xbf16>
    %5 = vector.shape_cast %4 : vector<1x32x96xbf16> to vector<32x96xbf16>
    %c0_5 = arith.constant 0 : index
    %c0_6 = arith.constant 0 : index
    %c0_7 = arith.constant 0 : index
    %6 = vector.load %arg4[%c0_5, %c0_6, %c0_7] : memref<1x32x32xbf16, #tpu.memory_space<vmem>>, vector<1x32x32xbf16>
    %7 = vector.shape_cast %6 : vector<1x32x32xbf16> to vector<32x32xbf16>
    %c0_8 = arith.constant 0 : index
    %c0_9 = arith.constant 0 : index
    %c0_10 = arith.constant 0 : index
    %8 = vector.load %arg5[%c0_8, %c0_9, %c0_10] : memref<1x32x128xbf16, #tpu.memory_space<vmem>>, vector<1x32x128xbf16>
    %9 = vector.shape_cast %8 : vector<1x32x128xbf16> to vector<32x128xbf16>
    %c0_11 = arith.constant 0 : index
    %c0_12 = arith.constant 0 : index
    %c0_13 = arith.constant 0 : index
    %10 = vector.load %arg6[%c0_11, %c0_12, %c0_13] : memref<1x128x32xbf16, #tpu.memory_space<vmem>>, vector<1x128x32xbf16>
    %11 = vector.shape_cast %10 : vector<1x128x32xbf16> to vector<128x32xbf16>
    %c0_14 = arith.constant 0 : index
    %c0_15 = arith.constant 0 : index
    %c0_16 = arith.constant 0 : index
    %12 = vector.load %arg9[%c0_14, %c0_15, %c0_16] : memref<1x6x32xf32, #tpu.memory_space<vmem>>, vector<1x6x32xf32>
    %13 = vector.shape_cast %12 : vector<1x6x32xf32> to vector<6x32xf32>
    %14 = vector.extract_strided_slice %13 {offsets = [0, 0], sizes = [1, 32], strides = [1, 1]} : vector<6x32xf32> to vector<1x32xf32>
    %15 = vector.extract_strided_slice %13 {offsets = [1, 0], sizes = [1, 32], strides = [1, 1]} : vector<6x32xf32> to vector<1x32xf32>
    %16 = vector.extract_strided_slice %13 {offsets = [2, 0], sizes = [1, 32], strides = [1, 1]} : vector<6x32xf32> to vector<1x32xf32>
    %17 = vector.extract_strided_slice %13 {offsets = [3, 0], sizes = [1, 32], strides = [1, 1]} : vector<6x32xf32> to vector<1x32xf32>
    %18 = vector.extract_strided_slice %13 {offsets = [4, 0], sizes = [1, 32], strides = [1, 1]} : vector<6x32xf32> to vector<1x32xf32>
    %19 = vector.extract_strided_slice %13 {offsets = [5, 0], sizes = [1, 32], strides = [1, 1]} : vector<6x32xf32> to vector<1x32xf32>
    %20 = arith.truncf %3 : vector<16x32xf32> to vector<16x32xbf16>
    %cst = arith.constant dense<0.000000e+00> : vector<16x96xf32>
    %21 = tpu.matmul %20, %5, %cst {dimension_numbers = #tpu.dot_dimension_numbers<[1], [0], [0], [1], [0, 0, 1, 1], [], []>} : vector<16x32xbf16>, vector<32x96xbf16>, vector<16x96xf32> -> vector<16x96xf32>
    %c0_17 = arith.constant 0 : index
    %c0_18 = arith.constant 0 : index
    %c0_19 = arith.constant 0 : index
    %22 = vector.load %arg7[%c0_17, %c0_18, %c0_19] : memref<1x1x96xf32, #tpu.memory_space<vmem>>, vector<1x1x96xf32>
    %23 = vector.shape_cast %22 : vector<1x1x96xf32> to vector<1x96xf32>
    %24 = vector.broadcast %23 : vector<1x96xf32> to vector<16x96xf32>
    %25 = arith.addf %21, %24 : vector<16x96xf32>
    %26 = arith.truncf %25 : vector<16x96xf32> to vector<16x96xbf16>
    %27 = vector.shape_cast %26 : vector<16x96xbf16> to vector<2x8x96xbf16>
    %28 = vector.extract_strided_slice %27 {offsets = [0, 0, 0], sizes = [2, 8, 8], strides = [1, 1, 1]} : vector<2x8x96xbf16> to vector<2x8x8xbf16>
    %29 = vector.extract_strided_slice %27 {offsets = [0, 0, 32], sizes = [2, 8, 8], strides = [1, 1, 1]} : vector<2x8x96xbf16> to vector<2x8x8xbf16>
    %30 = vector.extract_strided_slice %27 {offsets = [0, 0, 64], sizes = [2, 8, 8], strides = [1, 1, 1]} : vector<2x8x96xbf16> to vector<2x8x8xbf16>
    "tpu.trace_start"() <{level = 10 : i32, message = "bqd,bkd->bqk"}> : () -> ()
    %cst_20 = arith.constant dense<0.000000e+00> : vector<2x8x8xf32>
    %31 = tpu.matmul %28, %29, %cst_20 {dimension_numbers = #tpu.dot_dimension_numbers<[2], [2], [1], [1], [0, 0, 0, 1, 1, 1], [0], [0]>} : vector<2x8x8xbf16>, vector<2x8x8xbf16>, vector<2x8x8xf32> -> vector<2x8x8xf32>
    "tpu.trace_stop"() : () -> ()
    %cst_21 = arith.constant dense<0xFF800000> : vector<2x8xf32>
    %32 = vector.multi_reduction <maximumf>, %31, %cst_21 [2] : vector<2x8x8xf32> to vector<2x8xf32>
    %33 = vector.shape_cast %32 : vector<2x8xf32> to vector<2x8x1xf32>
    %34 = vector.broadcast %33 : vector<2x8x1xf32> to vector<2x8x8xf32>
    %35 = arith.subf %31, %34 : vector<2x8x8xf32>
    %36 = math.exp %35 : vector<2x8x8xf32>
    %cst_22 = arith.constant dense<0.000000e+00> : vector<2x8xf32>
    %37 = vector.multi_reduction <add>, %36, %cst_22 [2] : vector<2x8x8xf32> to vector<2x8xf32>
    %38 = vector.shape_cast %37 : vector<2x8xf32> to vector<2x8x1xf32>
    %39 = tpu.reciprocal %38 {approx = true} : vector<2x8x1xf32> -> vector<2x8x1xf32>
    %40 = vector.broadcast %39 : vector<2x8x1xf32> to vector<2x8x8xf32>
    %41 = arith.mulf %36, %40 : vector<2x8x8xf32>
    %42 = arith.truncf %41 : vector<2x8x8xf32> to vector<2x8x8xbf16>
    "tpu.trace_start"() <{level = 10 : i32, message = "bqk,bkd->bqd"}> : () -> ()
    %cst_23 = arith.constant dense<0.000000e+00> : vector<2x8x8xf32>
    %43 = tpu.matmul %42, %30, %cst_23 {dimension_numbers = #tpu.dot_dimension_numbers<[2], [1], [1], [2], [0, 0, 0, 1, 1, 2], [0], [0]>} : vector<2x8x8xbf16>, vector<2x8x8xbf16>, vector<2x8x8xf32> -> vector<2x8x8xf32>
    "tpu.trace_stop"() : () -> ()
    %44 = vector.shape_cast %43 : vector<2x8x8xf32> to vector<16x8xf32>
    %45 = arith.truncf %44 : vector<16x8xf32> to vector<16x8xbf16>
    %c0_24 = arith.constant 0 : index
    %c0_25 = arith.constant 0 : index
    %46 = vector.load %arg12[%c0_24, %c0_25] : memref<16x32xbf16, #tpu.memory_space<vmem>>, vector<16x8xbf16>
    tpu.vector_store %arg12[%c0_24, %c0_25], %45 {strides = array<i32>} : memref<16x32xbf16, #tpu.memory_space<vmem>>, vector<16x8xbf16>,
    %47 = vector.extract_strided_slice %27 {offsets = [0, 0, 8], sizes = [2, 8, 8], strides = [1, 1, 1]} : vector<2x8x96xbf16> to vector<2x8x8xbf16>
    %48 = vector.extract_strided_slice %27 {offsets = [0, 0, 40], sizes = [2, 8, 8], strides = [1, 1, 1]} : vector<2x8x96xbf16> to vector<2x8x8xbf16>
    %49 = vector.extract_strided_slice %27 {offsets = [0, 0, 72], sizes = [2, 8, 8], strides = [1, 1, 1]} : vector<2x8x96xbf16> to vector<2x8x8xbf16>
    "tpu.trace_start"() <{level = 10 : i32, message = "bqd,bkd->bqk"}> : () -> ()
    %cst_26 = arith.constant dense<0.000000e+00> : vector<2x8x8xf32>
    %50 = tpu.matmul %47, %48, %cst_26 {dimension_numbers = #tpu.dot_dimension_numbers<[2], [2], [1], [1], [0, 0, 0, 1, 1, 1], [0], [0]>} : vector<2x8x8xbf16>, vector<2x8x8xbf16>, vector<2x8x8xf32> -> vector<2x8x8xf32>
    "tpu.trace_stop"() : () -> ()
    %cst_27 = arith.constant dense<0xFF800000> : vector<2x8xf32>
    %51 = vector.multi_reduction <maximumf>, %50, %cst_27 [2] : vector<2x8x8xf32> to vector<2x8xf32>
    %52 = vector.shape_cast %51 : vector<2x8xf32> to vector<2x8x1xf32>
    %53 = vector.broadcast %52 : vector<2x8x1xf32> to vector<2x8x8xf32>
    %54 = arith.subf %50, %53 : vector<2x8x8xf32>
    %55 = math.exp %54 : vector<2x8x8xf32>
    %cst_28 = arith.constant dense<0.000000e+00> : vector<2x8xf32>
    %56 = vector.multi_reduction <add>, %55, %cst_28 [2] : vector<2x8x8xf32> to vector<2x8xf32>
    %57 = vector.shape_cast %56 : vector<2x8xf32> to vector<2x8x1xf32>
    %58 = tpu.reciprocal %57 {approx = true} : vector<2x8x1xf32> -> vector<2x8x1xf32>
    %59 = vector.broadcast %58 : vector<2x8x1xf32> to vector<2x8x8xf32>
    %60 = arith.mulf %55, %59 : vector<2x8x8xf32>
    %61 = arith.truncf %60 : vector<2x8x8xf32> to vector<2x8x8xbf16>
    "tpu.trace_start"() <{level = 10 : i32, message = "bqk,bkd->bqd"}> : () -> ()
    %cst_29 = arith.constant dense<0.000000e+00> : vector<2x8x8xf32>
    %62 = tpu.matmul %61, %49, %cst_29 {dimension_numbers = #tpu.dot_dimension_numbers<[2], [1], [1], [2], [0, 0, 0, 1, 1, 2], [0], [0]>} : vector<2x8x8xbf16>, vector<2x8x8xbf16>, vector<2x8x8xf32> -> vector<2x8x8xf32>
    "tpu.trace_stop"() : () -> ()
    %63 = vector.shape_cast %62 : vector<2x8x8xf32> to vector<16x8xf32>
    %64 = arith.truncf %63 : vector<16x8xf32> to vector<16x8xbf16>
    %c0_30 = arith.constant 0 : index
    %c8 = arith.constant 8 : index
    %65 = vector.load %arg12[%c0_30, %c8] : memref<16x32xbf16, #tpu.memory_space<vmem>>, vector<16x8xbf16>
    tpu.vector_store %arg12[%c0_30, %c8], %64 {strides = array<i32>} : memref<16x32xbf16, #tpu.memory_space<vmem>>, vector<16x8xbf16>,
    %66 = vector.extract_strided_slice %27 {offsets = [0, 0, 16], sizes = [2, 8, 8], strides = [1, 1, 1]} : vector<2x8x96xbf16> to vector<2x8x8xbf16>
    %67 = vector.extract_strided_slice %27 {offsets = [0, 0, 48], sizes = [2, 8, 8], strides = [1, 1, 1]} : vector<2x8x96xbf16> to vector<2x8x8xbf16>
    %68 = vector.extract_strided_slice %27 {offsets = [0, 0, 80], sizes = [2, 8, 8], strides = [1, 1, 1]} : vector<2x8x96xbf16> to vector<2x8x8xbf16>
    "tpu.trace_start"() <{level = 10 : i32, message = "bqd,bkd->bqk"}> : () -> ()
    %cst_31 = arith.constant dense<0.000000e+00> : vector<2x8x8xf32>
    %69 = tpu.matmul %66, %67, %cst_31 {dimension_numbers = #tpu.dot_dimension_numbers<[2], [2], [1], [1], [0, 0, 0, 1, 1, 1], [0], [0]>} : vector<2x8x8xbf16>, vector<2x8x8xbf16>, vector<2x8x8xf32> -> vector<2x8x8xf32>
    "tpu.trace_stop"() : () -> ()
    %cst_32 = arith.constant dense<0xFF800000> : vector<2x8xf32>
    %70 = vector.multi_reduction <maximumf>, %69, %cst_32 [2] : vector<2x8x8xf32> to vector<2x8xf32>
    %71 = vector.shape_cast %70 : vector<2x8xf32> to vector<2x8x1xf32>
    %72 = vector.broadcast %71 : vector<2x8x1xf32> to vector<2x8x8xf32>
    %73 = arith.subf %69, %72 : vector<2x8x8xf32>
    %74 = math.exp %73 : vector<2x8x8xf32>
    %cst_33 = arith.constant dense<0.000000e+00> : vector<2x8xf32>
    %75 = vector.multi_reduction <add>, %74, %cst_33 [2] : vector<2x8x8xf32> to vector<2x8xf32>
    %76 = vector.shape_cast %75 : vector<2x8xf32> to vector<2x8x1xf32>
    %77 = tpu.reciprocal %76 {approx = true} : vector<2x8x1xf32> -> vector<2x8x1xf32>
    %78 = vector.broadcast %77 : vector<2x8x1xf32> to vector<2x8x8xf32>
    %79 = arith.mulf %74, %78 : vector<2x8x8xf32>
    %80 = arith.truncf %79 : vector<2x8x8xf32> to vector<2x8x8xbf16>
    "tpu.trace_start"() <{level = 10 : i32, message = "bqk,bkd->bqd"}> : () -> ()
    %cst_34 = arith.constant dense<0.000000e+00> : vector<2x8x8xf32>
    %81 = tpu.matmul %80, %68, %cst_34 {dimension_numbers = #tpu.dot_dimension_numbers<[2], [1], [1], [2], [0, 0, 0, 1, 1, 2], [0], [0]>} : vector<2x8x8xbf16>, vector<2x8x8xbf16>, vector<2x8x8xf32> -> vector<2x8x8xf32>
    "tpu.trace_stop"() : () -> ()
    %82 = vector.shape_cast %81 : vector<2x8x8xf32> to vector<16x8xf32>
    %83 = arith.truncf %82 : vector<16x8xf32> to vector<16x8xbf16>
    %c0_35 = arith.constant 0 : index
    %c16 = arith.constant 16 : index
    %84 = vector.load %arg12[%c0_35, %c16] : memref<16x32xbf16, #tpu.memory_space<vmem>>, vector<16x8xbf16>
    tpu.vector_store %arg12[%c0_35, %c16], %83 {strides = array<i32>} : memref<16x32xbf16, #tpu.memory_space<vmem>>, vector<16x8xbf16>,
    %85 = vector.extract_strided_slice %27 {offsets = [0, 0, 24], sizes = [2, 8, 8], strides = [1, 1, 1]} : vector<2x8x96xbf16> to vector<2x8x8xbf16>
    %86 = vector.extract_strided_slice %27 {offsets = [0, 0, 56], sizes = [2, 8, 8], strides = [1, 1, 1]} : vector<2x8x96xbf16> to vector<2x8x8xbf16>
    %87 = vector.extract_strided_slice %27 {offsets = [0, 0, 88], sizes = [2, 8, 8], strides = [1, 1, 1]} : vector<2x8x96xbf16> to vector<2x8x8xbf16>
    "tpu.trace_start"() <{level = 10 : i32, message = "bqd,bkd->bqk"}> : () -> ()
    %cst_36 = arith.constant dense<0.000000e+00> : vector<2x8x8xf32>
    %88 = tpu.matmul %85, %86, %cst_36 {dimension_numbers = #tpu.dot_dimension_numbers<[2], [2], [1], [1], [0, 0, 0, 1, 1, 1], [0], [0]>} : vector<2x8x8xbf16>, vector<2x8x8xbf16>, vector<2x8x8xf32> -> vector<2x8x8xf32>
    "tpu.trace_stop"() : () -> ()
    %cst_37 = arith.constant dense<0xFF800000> : vector<2x8xf32>
    %89 = vector.multi_reduction <maximumf>, %88, %cst_37 [2] : vector<2x8x8xf32> to vector<2x8xf32>
    %90 = vector.shape_cast %89 : vector<2x8xf32> to vector<2x8x1xf32>
    %91 = vector.broadcast %90 : vector<2x8x1xf32> to vector<2x8x8xf32>
    %92 = arith.subf %88, %91 : vector<2x8x8xf32>
    %93 = math.exp %92 : vector<2x8x8xf32>
    %cst_38 = arith.constant dense<0.000000e+00> : vector<2x8xf32>
    %94 = vector.multi_reduction <add>, %93, %cst_38 [2] : vector<2x8x8xf32> to vector<2x8xf32>
    %95 = vector.shape_cast %94 : vector<2x8xf32> to vector<2x8x1xf32>
    %96 = tpu.reciprocal %95 {approx = true} : vector<2x8x1xf32> -> vector<2x8x1xf32>
    %97 = vector.broadcast %96 : vector<2x8x1xf32> to vector<2x8x8xf32>
    %98 = arith.mulf %93, %97 : vector<2x8x8xf32>
    %99 = arith.truncf %98 : vector<2x8x8xf32> to vector<2x8x8xbf16>
    "tpu.trace_start"() <{level = 10 : i32, message = "bqk,bkd->bqd"}> : () -> ()
    %cst_39 = arith.constant dense<0.000000e+00> : vector<2x8x8xf32>
    %100 = tpu.matmul %99, %87, %cst_39 {dimension_numbers = #tpu.dot_dimension_numbers<[2], [1], [1], [2], [0, 0, 0, 1, 1, 2], [0], [0]>} : vector<2x8x8xbf16>, vector<2x8x8xbf16>, vector<2x8x8xf32> -> vector<2x8x8xf32>
    "tpu.trace_stop"() : () -> ()
    %101 = vector.shape_cast %100 : vector<2x8x8xf32> to vector<16x8xf32>
    %102 = arith.truncf %101 : vector<16x8xf32> to vector<16x8xbf16>
    %c0_40 = arith.constant 0 : index
    %c24 = arith.constant 24 : index
    %103 = vector.load %arg12[%c0_40, %c24] : memref<16x32xbf16, #tpu.memory_space<vmem>>, vector<16x8xbf16>
    tpu.vector_store %arg12[%c0_40, %c24], %102 {strides = array<i32>} : memref<16x32xbf16, #tpu.memory_space<vmem>>, vector<16x8xbf16>,
    %c0_41 = arith.constant 0 : index
    %c0_42 = arith.constant 0 : index
    %104 = vector.load %arg12[%c0_41, %c0_42] : memref<16x32xbf16, #tpu.memory_space<vmem>>, vector<16x32xbf16>
    %cst_43 = arith.constant dense<0.000000e+00> : vector<16x32xf32>
    %105 = tpu.matmul %104, %7, %cst_43 {dimension_numbers = #tpu.dot_dimension_numbers<[1], [0], [0], [1], [0, 0, 1, 1], [], []>} : vector<16x32xbf16>, vector<32x32xbf16>, vector<16x32xf32> -> vector<16x32xf32>
    %106 = vector.broadcast %14 : vector<1x32xf32> to vector<16x32xf32>
    %107 = arith.addf %105, %106 : vector<16x32xf32>
    %108 = arith.addf %3, %107 : vector<16x32xf32>
    %cst_44 = arith.constant dense<0.000000e+00> : vector<16xf32>
    %109 = vector.multi_reduction <add>, %108, %cst_44 [1] : vector<16x32xf32> to vector<16xf32>
    %110 = vector.shape_cast %109 : vector<16xf32> to vector<16x1xf32>
    %cst_45 = arith.constant 3.200000e+01 : f32
    %111 = vector.broadcast %cst_45 : f32 to vector<16x1xf32>
    %112 = arith.divf %110, %111 : vector<16x1xf32>
    %113 = vector.broadcast %112 : vector<16x1xf32> to vector<16x32xf32>
    %114 = arith.subf %108, %113 : vector<16x32xf32>
    %115 = arith.mulf %114, %114 : vector<16x32xf32>
    %cst_46 = arith.constant dense<0.000000e+00> : vector<16xf32>
    %116 = vector.multi_reduction <add>, %115, %cst_46 [1] : vector<16x32xf32> to vector<16xf32>
    %117 = vector.shape_cast %116 : vector<16xf32> to vector<16x1xf32>
    %cst_47 = arith.constant 3.200000e+01 : f32
    %118 = vector.broadcast %cst_47 : f32 to vector<16x1xf32>
    %119 = arith.divf %117, %118 : vector<16x1xf32>
    %cst_48 = arith.constant 9.99999974E-6 : f32
    %120 = vector.broadcast %cst_48 : f32 to vector<16x1xf32>
    %121 = arith.addf %119, %120 : vector<16x1xf32>
    %122 = math.rsqrt %121 : vector<16x1xf32>
    %123 = vector.broadcast %122 : vector<16x1xf32> to vector<16x32xf32>
    %124 = arith.mulf %114, %123 : vector<16x32xf32>
    %125 = vector.broadcast %15 : vector<1x32xf32> to vector<16x32xf32>
    %126 = arith.mulf %124, %125 : vector<16x32xf32>
    %127 = vector.broadcast %16 : vector<1x32xf32> to vector<16x32xf32>
    %128 = arith.addf %126, %127 : vector<16x32xf32>
    %129 = arith.truncf %128 : vector<16x32xf32> to vector<16x32xbf16>
    %cst_49 = arith.constant dense<0.000000e+00> : vector<16x128xf32>
    %130 = tpu.matmul %129, %9, %cst_49 {dimension_numbers = #tpu.dot_dimension_numbers<[1], [0], [0], [1], [0, 0, 1, 1], [], []>} : vector<16x32xbf16>, vector<32x128xbf16>, vector<16x128xf32> -> vector<16x128xf32>
    %c0_50 = arith.constant 0 : index
    %c0_51 = arith.constant 0 : index
    %c0_52 = arith.constant 0 : index
    %131 = vector.load %arg8[%c0_50, %c0_51, %c0_52] : memref<1x1x128xf32, #tpu.memory_space<vmem>>, vector<1x1x128xf32>
    %132 = vector.shape_cast %131 : vector<1x1x128xf32> to vector<1x128xf32>
    %133 = vector.broadcast %132 : vector<1x128xf32> to vector<16x128xf32>
    %134 = arith.addf %130, %133 : vector<16x128xf32>
    %cst_53 = arith.constant 0.000000e+00 : f32
    %135 = vector.broadcast %cst_53 : f32 to vector<16x128xf32>
    %136 = arith.maximumf %134, %135 : vector<16x128xf32>
    %137 = arith.truncf %136 : vector<16x128xf32> to vector<16x128xbf16>
    %cst_54 = arith.constant dense<0.000000e+00> : vector<16x32xf32>
    %138 = tpu.matmul %137, %11, %cst_54 {dimension_numbers = #tpu.dot_dimension_numbers<[1], [0], [0], [1], [0, 0, 1, 1], [], []>} : vector<16x128xbf16>, vector<128x32xbf16>, vector<16x32xf32> -> vector<16x32xf32>
    %139 = vector.broadcast %17 : vector<1x32xf32> to vector<16x32xf32>
    %140 = arith.addf %138, %139 : vector<16x32xf32>
    %141 = arith.addf %128, %140 : vector<16x32xf32>
    %cst_55 = arith.constant dense<0.000000e+00> : vector<16xf32>
    %142 = vector.multi_reduction <add>, %141, %cst_55 [1] : vector<16x32xf32> to vector<16xf32>
    %143 = vector.shape_cast %142 : vector<16xf32> to vector<16x1xf32>
    %cst_56 = arith.constant 3.200000e+01 : f32
    %144 = vector.broadcast %cst_56 : f32 to vector<16x1xf32>
    %145 = arith.divf %143, %144 : vector<16x1xf32>
    %146 = vector.broadcast %145 : vector<16x1xf32> to vector<16x32xf32>
    %147 = arith.subf %141, %146 : vector<16x32xf32>
    %148 = arith.mulf %147, %147 : vector<16x32xf32>
    %cst_57 = arith.constant dense<0.000000e+00> : vector<16xf32>
    %149 = vector.multi_reduction <add>, %148, %cst_57 [1] : vector<16x32xf32> to vector<16xf32>
    %150 = vector.shape_cast %149 : vector<16xf32> to vector<16x1xf32>
    %cst_58 = arith.constant 3.200000e+01 : f32
    %151 = vector.broadcast %cst_58 : f32 to vector<16x1xf32>
    %152 = arith.divf %150, %151 : vector<16x1xf32>
    %cst_59 = arith.constant 9.99999974E-6 : f32
    %153 = vector.broadcast %cst_59 : f32 to vector<16x1xf32>
    %154 = arith.addf %152, %153 : vector<16x1xf32>
    %155 = math.rsqrt %154 : vector<16x1xf32>
    %156 = vector.broadcast %155 : vector<16x1xf32> to vector<16x32xf32>
    %157 = arith.mulf %147, %156 : vector<16x32xf32>
    %158 = vector.broadcast %18 : vector<1x32xf32> to vector<16x32xf32>
    %159 = arith.mulf %157, %158 : vector<16x32xf32>
    %160 = vector.broadcast %19 : vector<1x32xf32> to vector<16x32xf32>
    %161 = arith.addf %159, %160 : vector<16x32xf32>
    %c0_60 = arith.constant 0 : index
    %c0_61 = arith.constant 0 : index
    %162 = vector.load %arg11[%c0_60, %c0_61] : memref<16x32xf32, #tpu.memory_space<vmem>>, vector<16x32xf32>
    tpu.vector_store %arg11[%c0_60, %c0_61], %161 {strides = array<i32>} : memref<16x32xf32, #tpu.memory_space<vmem>>, vector<16x32xf32>,
    %c1_i32 = arith.constant 1 : i32
    %163 = arith.cmpi eq, %arg1, %c1_i32 : i32
    %164 = arith.extui %163 : i1 to i32
    %c0_i32_62 = arith.constant 0 : i32
    %165 = arith.cmpi ne, %164, %c0_i32_62 : i32
    scf.if %165 {
      %166 = vector.shape_cast %161 : vector<16x32xf32> to vector<2x8x32xf32>
      %167 = vector.extract_strided_slice %166 {offsets = [0, 7, 0], sizes = [2, 1, 32], strides = [1, 1, 1]} : vector<2x8x32xf32> to vector<2x1x32xf32>
      %168 = vector.shape_cast %167 : vector<2x1x32xf32> to vector<2x32xf32>
      %169 = vector.shape_cast %168 : vector<2x32xf32> to vector<1x2x32xf32>
      %c0_63 = arith.constant 0 : index
      %c0_64 = arith.constant 0 : index
      %c0_65 = arith.constant 0 : index
      %170 = vector.load %arg10[%c0_63, %c0_64, %c0_65] : memref<1x2x32xf32, #tpu.memory_space<vmem>>, vector<1x2x32xf32>
      tpu.vector_store %arg10[%c0_63, %c0_64, %c0_65], %169 {strides = array<i32>} : memref<1x2x32xf32, #tpu.memory_space<vmem>>, vector<1x2x32xf32>,
    } else {
    }
    return
  }
  func.func @transform_0(%arg0: i32, %arg1: i32) -> (i32, i32, i32) {
    %c0_i32 = arith.constant 0 : i32
    %c0_i32_0 = arith.constant 0 : i32
    %c0_i32_1 = arith.constant 0 : i32
    return %arg0, %c0_i32, %c0_i32_0 : i32, i32, i32
  }
  func.func @transform_1(%arg0: i32, %arg1: i32) -> (i32, i32, i32) {
    %c0_i32 = arith.constant 0 : i32
    %c0_i32_0 = arith.constant 0 : i32
    %c0_i32_1 = arith.constant 0 : i32
    return %arg1, %c0_i32, %c0_i32_0 : i32, i32, i32
  }
  func.func @transform_2(%arg0: i32, %arg1: i32) -> (i32, i32, i32) {
    %c0_i32 = arith.constant 0 : i32
    %c0_i32_0 = arith.constant 0 : i32
    %c0_i32_1 = arith.constant 0 : i32
    return %arg1, %c0_i32, %c0_i32_0 : i32, i32, i32
  }
  func.func @transform_3(%arg0: i32, %arg1: i32) -> (i32, i32, i32) {
    %c0_i32 = arith.constant 0 : i32
    %c0_i32_0 = arith.constant 0 : i32
    %c0_i32_1 = arith.constant 0 : i32
    return %arg1, %c0_i32, %c0_i32_0 : i32, i32, i32
  }
  func.func @transform_4(%arg0: i32, %arg1: i32) -> (i32, i32, i32) {
    %c0_i32 = arith.constant 0 : i32
    %c0_i32_0 = arith.constant 0 : i32
    %c0_i32_1 = arith.constant 0 : i32
    return %arg1, %c0_i32, %c0_i32_0 : i32, i32, i32
  }
  func.func @transform_5(%arg0: i32, %arg1: i32) -> (i32, i32, i32) {
    %c0_i32 = arith.constant 0 : i32
    %c0_i32_0 = arith.constant 0 : i32
    %c0_i32_1 = arith.constant 0 : i32
    return %arg1, %c0_i32, %c0_i32_0 : i32, i32, i32
  }
  func.func @transform_6(%arg0: i32, %arg1: i32) -> (i32, i32, i32) {
    %c0_i32 = arith.constant 0 : i32
    %c0_i32_0 = arith.constant 0 : i32
    %c0_i32_1 = arith.constant 0 : i32
    return %arg1, %c0_i32, %c0_i32_0 : i32, i32, i32
  }
  func.func @transform_7(%arg0: i32, %arg1: i32) -> (i32, i32, i32) {
    %c0_i32 = arith.constant 0 : i32
    %c0_i32_0 = arith.constant 0 : i32
    %c0_i32_1 = arith.constant 0 : i32
    return %arg1, %c0_i32, %c0_i32_0 : i32, i32, i32
  }
  func.func @transform_8(%arg0: i32, %arg1: i32) -> (i32, i32, i32) {
    %c0_i32 = arith.constant 0 : i32
    %c0_i32_0 = arith.constant 0 : i32
    %c0_i32_1 = arith.constant 0 : i32
    return %arg0, %c0_i32, %c0_i32_0 : i32, i32, i32
  }
}

</mosaic_0001>

<llo_original>
// kernel: tpu_custom_call.1
$region0: #{tpu_custom_call.1}
  #allocation0 [shape = 'u32[]', space=smem, size = 0x4, offset = 0x4, fixed_abs, tag = 'smem constant byte address 0x4 - core index']
  #allocation1 [shape = 'u32[144,128]{1,0:T(1,128)}', space=vmem, size = 0x12000, scoped, tag = 'internal scratch']
  #allocation2 [shape = 'f32[16,32]{1,0:T(8,128)}', space=vmem, size = 0x2000, scoped, tag = 'scratch operand']
  #allocation3 [shape = 'bf16[16,32]{1,0:T(8,128)(2,1)}', space=vmem, size = 0x1000, scoped, tag = 'scratch operand']
  %s0 = inlined_call_operand.vmem [shape: f32[2,8,32], index: 0, kind: input, shape index: {}]
  %s1 = inlined_call_operand.vmem [shape: bf16[2,32,96], index: 1, kind: input, shape index: {}]
  %s2 = inlined_call_operand.vmem [shape: bf16[2,32,32], index: 2, kind: input, shape index: {}]
  %s3 = inlined_call_operand.vmem [shape: bf16[2,32,128], index: 3, kind: input, shape index: {}]
  %s4 = inlined_call_operand.vmem [shape: bf16[2,128,32], index: 4, kind: input, shape index: {}]
  %s5 = inlined_call_operand.vmem [shape: f32[2,1,96], index: 5, kind: input, shape index: {}]
  %s6 = inlined_call_operand.vmem [shape: f32[2,1,128], index: 6, kind: input, shape index: {}]
  %s7 = inlined_call_operand.vmem [shape: f32[2,6,32], index: 7, kind: input, shape index: {}]
  %s8 = inlined_call_operand.hbm [shape: f32[1,2,32], index: 8, kind: output, shape index: {}]
  %s9 = sld [smem:[#allocation0]]
  $region73: #{tpu_custom_call.1} parent=0
    _
  %s11 = ssub.s32 1, %s9
  %s12 = scalar_select 0, %s11, %s9
  $region1: #{tpu_custom_call.1} parent=0
    #allocation4 [shape = 'u8[1024]{0}', space=vmem, size = 0x400, scoped, tag = 'output window, operand 0, single buffered']
    #allocation5 [shape = 's32[2]{0}', space=sflag, size = 0x8, scoped, tag = 'scoped memory for tpu_custom_call.1']
    %13 = vsyncpa [#allocation5], 0
    loop: start=0, step=1, limit=4
    $region2: #{tpu_custom_call.1} parent=1 // loop_pre_header
      _
    $region3: #{tpu_custom_call.1} parent=1 // loop_header
      %s15 = sphi 0, %s19
      %p16 = scmp.ge.s32.totalorder %s15, 4
      %s22 = sphi 0, %s34
      %s23 = sphi 0, %s30
      %s24 = sphi 0, %s22
      %s25 = sphi 0, %s23
      %s26 = sphi 0, %s24
      %s27 = sphi 0, %s25
      %s37 = sphi 0, %s39
      %s40 = sphi 0, %s37
      %s41 = sphi 0, %s40
      %s57 = sphi 0, %s41
      %s63 = sphi 0, %s65
      %s66 = sphi 0, %s63
      %s67 = sphi 0, %s66
      %s83 = sphi 0, %s67
      %s89 = sphi 0, %s91
      %s92 = sphi 0, %s89
      %s93 = sphi 0, %s92
      %s109 = sphi 0, %s93
      %s115 = sphi 0, %s117
      %s118 = sphi 0, %s115
      %s119 = sphi 0, %s118
      %s135 = sphi 0, %s119
      %s141 = sphi 0, %s143
      %s144 = sphi 0, %s141
      %s145 = sphi 0, %s144
      %s161 = sphi 0, %s145
      %s167 = sphi 0, %s169
      %s170 = sphi 0, %s167
      %s171 = sphi 0, %s170
      %s187 = sphi 0, %s171
      %s193 = sphi 0, %s195
      %s196 = sphi 0, %s193
      %s197 = sphi 0, %s196
      %s213 = sphi 0, %s197
      %s219 = sphi 0, %s221
      %s222 = sphi 0, %s219
      %s223 = sphi 0, %s222
      %s239 = sphi 0, %s223
      %s245 = sphi 0, %s247
      %s248 = sphi 0, %s245
      %s249 = sphi 0, %s248
      %s265 = sphi 0, %s249
    $region4: #{tpu_custom_call.1} parent=1 // loop_header_branch
      %18 = sbr.rel (%p16) target = $region8
    $region5: #{tpu_custom_call.1} parent=1 // loop_body
      %s20 = ssub.s32 %s15, 1
      %s21 = ssub.s32 %s15, 2
      %s28 = sadd.s32 1, %s23
      %p29 = scmp.ge.s32.totalorder %s28, 2
      %s30 = scalar_select %p29, 0, %s28
      %s31 = sadd.s32 1, %s22
      %s32 = scalar_select %p29, %s31, %s22
      %p33 = scmp.ge.s32.totalorder %s32, 1
      %s34 = scalar_select %p33, 0, %s32
      %s35 = ssub.s32 %s22, %s34
      %p36 = scmp.eq.s32.totalorder %s35, 0
      %s38 = sadd.s32 %s37, 1
      %s39 = scalar_select %p36, %s37, %s38
      %p42 = pneg %p36
      %p43 = scmp.eq.s32.totalorder %s15, 1
      %p44 = por %p42, %p43
      %p45 = scmp.ne.s32.totalorder %s37, %s40
      %p46 = scmp.eq.s32.totalorder %s15, 0
      %p47 = por %p45, %p46
      %p48 = scmp.ne.s32.totalorder %s37, %s40
      %p49 = scmp.eq.s32.totalorder %s20, 1
      %p50 = por %p48, %p49
      %p51 = scmp.ne.s32.totalorder %s40, %s41
      %p52 = scmp.eq.s32.totalorder %s20, 0
      %p53 = por %p51, %p52
      %p54 = scmp.ne.s32.totalorder %s40, %s41
      %p55 = scmp.eq.s32.totalorder %s21, 1
      %p56 = por %p54, %p55
      %p58 = scmp.ne.s32.totalorder %s41, %s57
      %p59 = scmp.eq.s32.totalorder %s21, 0
      %p60 = por %p58, %p59
      %s61 = ssub.s32 %s23, %s30
      %p62 = scmp.eq.s32.totalorder %s61, 0
      %s64 = sadd.s32 %s63, 1
      %s65 = scalar_select %p62, %s63, %s64
      %p68 = pneg %p62
      %p69 = scmp.eq.s32.totalorder %s15, 1
      %p70 = por %p68, %p69
      %p71 = scmp.ne.s32.totalorder %s63, %s66
      %p72 = scmp.eq.s32.totalorder %s15, 0
      %p73 = por %p71, %p72
      %p74 = scmp.ne.s32.totalorder %s63, %s66
      %p75 = scmp.eq.s32.totalorder %s20, 1
      %p76 = por %p74, %p75
      %p77 = scmp.ne.s32.totalorder %s66, %s67
      %p78 = scmp.eq.s32.totalorder %s20, 0
      %p79 = por %p77, %p78
      %p80 = scmp.ne.s32.totalorder %s66, %s67
      %p81 = scmp.eq.s32.totalorder %s21, 1
      %p82 = por %p80, %p81
      %p84 = scmp.ne.s32.totalorder %s67, %s83
      %p85 = scmp.eq.s32.totalorder %s21, 0
      %p86 = por %p84, %p85
      %s87 = ssub.s32 %s23, %s30
      %p88 = scmp.eq.s32.totalorder %s87, 0
      %s90 = sadd.s32 %s89, 1
      %s91 = scalar_select %p88, %s89, %s90
      %p94 = pneg %p88
      %p95 = scmp.eq.s32.totalorder %s15, 1
      %p96 = por %p94, %p95
      %p97 = scmp.ne.s32.totalorder %s89, %s92
      %p98 = scmp.eq.s32.totalorder %s15, 0
      %p99 = por %p97, %p98
      %p100 = scmp.ne.s32.totalorder %s89, %s92
      %p101 = scmp.eq.s32.totalorder %s20, 1
      %p102 = por %p100, %p101
      %p103 = scmp.ne.s32.totalorder %s92, %s93
      %p104 = scmp.eq.s32.totalorder %s20, 0
      %p105 = por %p103, %p104
      %p106 = scmp.ne.s32.totalorder %s92, %s93
      %p107 = scmp.eq.s32.totalorder %s21, 1
      %p108 = por %p106, %p107
      %p110 = scmp.ne.s32.totalorder %s93, %s109
      %p111 = scmp.eq.s32.totalorder %s21, 0
      %p112 = por %p110, %p111
      %s113 = ssub.s32 %s23, %s30
      %p114 = scmp.eq.s32.totalorder %s113, 0
      %s116 = sadd.s32 %s115, 1
      %s117 = scalar_select %p114, %s115, %s116
      %p120 = pneg %p114
      %p121 = scmp.eq.s32.totalorder %s15, 1
      %p122 = por %p120, %p121
      %p123 = scmp.ne.s32.totalorder %s115, %s118
      %p124 = scmp.eq.s32.totalorder %s15, 0
      %p125 = por %p123, %p124
      %p126 = scmp.ne.s32.totalorder %s115, %s118
      %p127 = scmp.eq.s32.totalorder %s20, 1
      %p128 = por %p126, %p127
      %p129 = scmp.ne.s32.totalorder %s118, %s119
      %p130 = scmp.eq.s32.totalorder %s20, 0
      %p131 = por %p129, %p130
      %p132 = scmp.ne.s32.totalorder %s118, %s119
      %p133 = scmp.eq.s32.totalorder %s21, 1
      %p134 = por %p132, %p133
      %p136 = scmp.ne.s32.totalorder %s119, %s135
      %p137 = scmp.eq.s32.totalorder %s21, 0
      %p138 = por %p136, %p137
      %s139 = ssub.s32 %s23, %s30
      %p140 = scmp.eq.s32.totalorder %s139, 0
      %s142 = sadd.s32 %s141, 1
      %s143 = scalar_select %p140, %s141, %s142
      %p146 = pneg %p140
      %p147 = scmp.eq.s32.totalorder %s15, 1
      %p148 = por %p146, %p147
      %p149 = scmp.ne.s32.totalorder %s141, %s144
      %p150 = scmp.eq.s32.totalorder %s15, 0
      %p151 = por %p149, %p150
      %p152 = scmp.ne.s32.totalorder %s141, %s144
      %p153 = scmp.eq.s32.totalorder %s20, 1
      %p154 = por %p152, %p153
      %p155 = scmp.ne.s32.totalorder %s144, %s145
      %p156 = scmp.eq.s32.totalorder %s20, 0
      %p157 = por %p155, %p156
      %p158 = scmp.ne.s32.totalorder %s144, %s145
      %p159 = scmp.eq.s32.totalorder %s21, 1
      %p160 = por %p158, %p159
      %p162 = scmp.ne.s32.totalorder %s145, %s161
      %p163 = scmp.eq.s32.totalorder %s21, 0
      %p164 = por %p162, %p163
      %s165 = ssub.s32 %s23, %s30
      %p166 = scmp.eq.s32.totalorder %s165, 0
      %s168 = sadd.s32 %s167, 1
      %s169 = scalar_select %p166, %s167, %s168
      %p172 = pneg %p166
      %p173 = scmp.eq.s32.totalorder %s15, 1
      %p174 = por %p172, %p173
      %p175 = scmp.ne.s32.totalorder %s167, %s170
      %p176 = scmp.eq.s32.totalorder %s15, 0
      %p177 = por %p175, %p176
      %p178 = scmp.ne.s32.totalorder %s167, %s170
      %p179 = scmp.eq.s32.totalorder %s20, 1
      %p180 = por %p178, %p179
      %p181 = scmp.ne.s32.totalorder %s170, %s171
      %p182 = scmp.eq.s32.totalorder %s20, 0
      %p183 = por %p181, %p182
      %p184 = scmp.ne.s32.totalorder %s170, %s171
      %p185 = scmp.eq.s32.totalorder %s21, 1
      %p186 = por %p184, %p185
      %p188 = scmp.ne.s32.totalorder %s171, %s187
      %p189 = scmp.eq.s32.totalorder %s21, 0
      %p190 = por %p188, %p189
      %s191 = ssub.s32 %s23, %s30
      %p192 = scmp.eq.s32.totalorder %s191, 0
      %s194 = sadd.s32 %s193, 1
      %s195 = scalar_select %p192, %s193, %s194
      %p198 = pneg %p192
      %p199 = scmp.eq.s32.totalorder %s15, 1
      %p200 = por %p198, %p199
      %p201 = scmp.ne.s32.totalorder %s193, %s196
      %p202 = scmp.eq.s32.totalorder %s15, 0
      %p203 = por %p201, %p202
      %p204 = scmp.ne.s32.totalorder %s193, %s196
      %p205 = scmp.eq.s32.totalorder %s20, 1
      %p206 = por %p204, %p205
      %p207 = scmp.ne.s32.totalorder %s196, %s197
      %p208 = scmp.eq.s32.totalorder %s20, 0
      %p209 = por %p207, %p208
      %p210 = scmp.ne.s32.totalorder %s196, %s197
      %p211 = scmp.eq.s32.totalorder %s21, 1
      %p212 = por %p210, %p211
      %p214 = scmp.ne.s32.totalorder %s197, %s213
      %p215 = scmp.eq.s32.totalorder %s21, 0
      %p216 = por %p214, %p215
      %s217 = ssub.s32 %s23, %s30
      %p218 = scmp.eq.s32.totalorder %s217, 0
      %s220 = sadd.s32 %s219, 1
      %s221 = scalar_select %p218, %s219, %s220
      %p224 = pneg %p218
      %p225 = scmp.eq.s32.totalorder %s15, 1
      %p226 = por %p224, %p225
      %p227 = scmp.ne.s32.totalorder %s219, %s222
      %p228 = scmp.eq.s32.totalorder %s15, 0
      %p229 = por %p227, %p228
      %p230 = scmp.ne.s32.totalorder %s219, %s222
      %p231 = scmp.eq.s32.totalorder %s20, 1
      %p232 = por %p230, %p231
      %p233 = scmp.ne.s32.totalorder %s222, %s223
      %p234 = scmp.eq.s32.totalorder %s20, 0
      %p235 = por %p233, %p234
      %p236 = scmp.ne.s32.totalorder %s222, %s223
      %p237 = scmp.eq.s32.totalorder %s21, 1
      %p238 = por %p236, %p237
      %p240 = scmp.ne.s32.totalorder %s223, %s239
      %p241 = scmp.eq.s32.totalorder %s21, 0
      %p242 = por %p240, %p241
      %s243 = ssub.s32 %s22, %s34
      %p244 = scmp.eq.s32.totalorder %s243, 0
      %s246 = sadd.s32 %s245, 1
      %s247 = scalar_select %p244, %s245, %s246
      %p250 = pneg %p244
      %p251 = scmp.eq.s32.totalorder %s15, 1
      %p252 = por %p250, %p251
      %p253 = scmp.ne.s32.totalorder %s245, %s248
      %p254 = scmp.eq.s32.totalorder %s15, 0
      %p255 = por %p253, %p254
      %p256 = scmp.ne.s32.totalorder %s245, %s248
      %p257 = scmp.eq.s32.totalorder %s20, 1
      %p258 = por %p256, %p257
      %p259 = scmp.ne.s32.totalorder %s248, %s249
      %p260 = scmp.eq.s32.totalorder %s20, 0
      %p261 = por %p259, %p260
      %p262 = scmp.ne.s32.totalorder %s248, %s249
      %p263 = scmp.eq.s32.totalorder %s21, 1
      %p264 = por %p262, %p263
      %p266 = scmp.ne.s32.totalorder %s249, %s265
      %p267 = scmp.eq.s32.totalorder %s21, 0
      %p268 = por %p266, %p267
      %p269 = scmp.le.s32.totalorder 1, %s15
      %p270 = scmp.lt.s32.totalorder %s15, 3
      %p271 = pnand %p269, %p270
      %p272 = pneg %p271
      // Predicated region
      $region9: #{tpu_custom_call.1} parent=5 // pred_check
        _
      $region10: #{tpu_custom_call.1} parent=5 // pred_check_branch
        %274 = sbr.rel (%p271) target = $region12
      $region11: #{tpu_custom_call.1} parent=5 // pred_region
        %s275 = ssub.s32 %s15, 1
        // Predicated region
        $region13: #{tpu_custom_call.1} parent=11 // pred_check
          %p276 = pneg %p53
        $region14: #{tpu_custom_call.1} parent=11 // pred_check_branch
          %278 = sbr.rel (%p276) target = $region16
        $region15: #{tpu_custom_call.1} parent=11 // pred_region
          %s279 = smul.u32 2, %s24
          %p280 = scmp.lt.s32.totalorder %s279, 1
          %s281 = scalar_select %p280, %s279, 1
          %s282 = smul.addr %s281, 8
          %s283 = scalar_lea.vmem %s0, %s282
          %s284 = smul.u32 2, %s24
        $region16: #{tpu_custom_call.1} parent=11 // pred_fallthru
          _
      $region12: #{tpu_custom_call.1} parent=5 // pred_fallthru
        _
      %p285 = scmp.lt.s32.totalorder %s15, 2
      // Predicated region
      $region17: #{tpu_custom_call.1} parent=5 // pred_check
        %p286 = pneg %p285
      $region18: #{tpu_custom_call.1} parent=5 // pred_check_branch
        %288 = sbr.rel (%p286) target = $region20
      $region19: #{tpu_custom_call.1} parent=5 // pred_region
        // Predicated region
        $region21: #{tpu_custom_call.1} parent=19 // pred_check
          %p289 = pneg %p73
        $region22: #{tpu_custom_call.1} parent=19 // pred_check_branch
          %291 = sbr.rel (%p289) target = $region24
        $region23: #{tpu_custom_call.1} parent=19 // pred_region
          %p292 = scmp.lt.s32.totalorder %s23, 1
          %s293 = scalar_select %p292, %s23, 1
          %s294 = smul.addr %s293, 4
          %s295 = smul.addr %s294, 4
          %s296 = scalar_lea.vmem %s1, %s295
        $region24: #{tpu_custom_call.1} parent=19 // pred_fallthru
          _
        // Predicated region
        $region25: #{tpu_custom_call.1} parent=19 // pred_check
          %p297 = pneg %p99
        $region26: #{tpu_custom_call.1} parent=19 // pred_check_branch
          %299 = sbr.rel (%p297) target = $region28
        $region27: #{tpu_custom_call.1} parent=19 // pred_region
          %p300 = scmp.lt.s32.totalorder %s23, 1
          %s301 = scalar_select %p300, %s23, 1
          %s302 = smul.addr %s301, 4
          %s303 = smul.addr %s302, 4
          %s304 = scalar_lea.vmem %s2, %s303
        $region28: #{tpu_custom_call.1} parent=19 // pred_fallthru
          _
        // Predicated region
        $region29: #{tpu_custom_call.1} parent=19 // pred_check
          %p305 = pneg %p125
        $region30: #{tpu_custom_call.1} parent=19 // pred_check_branch
          %307 = sbr.rel (%p305) target = $region32
        $region31: #{tpu_custom_call.1} parent=19 // pred_region
          %p308 = scmp.lt.s32.totalorder %s23, 1
          %s309 = scalar_select %p308, %s23, 1
          %s310 = smul.addr %s309, 4
          %s311 = smul.addr %s310, 4
          %s312 = scalar_lea.vmem %s3, %s311
        $region32: #{tpu_custom_call.1} parent=19 // pred_fallthru
          _
        // Predicated region
        $region33: #{tpu_custom_call.1} parent=19 // pred_check
          %p313 = pneg %p151
        $region34: #{tpu_custom_call.1} parent=19 // pred_check_branch
          %315 = sbr.rel (%p313) target = $region36
        $region35: #{tpu_custom_call.1} parent=19 // pred_region
          %p316 = scmp.lt.s32.totalorder %s23, 1
          %s317 = scalar_select %p316, %s23, 1
          %s318 = smul.addr %s317, 16
          %s319 = smul.addr %s318, 4
          %s320 = scalar_lea.vmem %s4, %s319
        $region36: #{tpu_custom_call.1} parent=19 // pred_fallthru
          _
        // Predicated region
        $region37: #{tpu_custom_call.1} parent=19 // pred_check
          %p321 = pneg %p177
        $region38: #{tpu_custom_call.1} parent=19 // pred_check_branch
          %323 = sbr.rel (%p321) target = $region40
        $region39: #{tpu_custom_call.1} parent=19 // pred_region
          %p324 = scmp.lt.s32.totalorder %s23, 1
          %s325 = scalar_select %p324, %s23, 1
          %s326 = scalar_lea.vmem %s5, %s325
        $region40: #{tpu_custom_call.1} parent=19 // pred_fallthru
          _
        // Predicated region
        $region41: #{tpu_custom_call.1} parent=19 // pred_check
          %p327 = pneg %p203
        $region42: #{tpu_custom_call.1} parent=19 // pred_check_branch
          %329 = sbr.rel (%p327) target = $region44
        $region43: #{tpu_custom_call.1} parent=19 // pred_region
          %p330 = scmp.lt.s32.totalorder %s23, 1
          %s331 = scalar_select %p330, %s23, 1
          %s332 = scalar_lea.vmem %s6, %s331
        $region44: #{tpu_custom_call.1} parent=19 // pred_fallthru
          _
        // Predicated region
        $region45: #{tpu_custom_call.1} parent=19 // pred_check
          %p333 = pneg %p229
        $region46: #{tpu_custom_call.1} parent=19 // pred_check_branch
          %335 = sbr.rel (%p333) target = $region48
        $region47: #{tpu_custom_call.1} parent=19 // pred_region
          %p336 = scmp.lt.s32.totalorder %s23, 1
          %s337 = scalar_select %p336, %s23, 1
          %s338 = smul.addr %s337, 8
          %s339 = scalar_lea.vmem %s7, %s338
        $region48: #{tpu_custom_call.1} parent=19 // pred_fallthru
          _
      $region20: #{tpu_custom_call.1} parent=5 // pred_fallthru
        _
      %p340 = scmp.le.s32.totalorder 1, %s15
      %p341 = scmp.lt.s32.totalorder %s15, 3
      %p342 = pnand %p340, %p341
      %p343 = pneg %p342
      // Predicated region
      $region49: #{tpu_custom_call.1} parent=5 // pred_check
        _
      $region50: #{tpu_custom_call.1} parent=5 // pred_check_branch
        %345 = sbr.rel (%p342) target = $region52
      $region51: #{tpu_custom_call.1} parent=5 // pred_region
        %s346 = ssub.s32 %s15, 1
        %s347 = smul.u32 2, %s24
        %p348 = scmp.lt.s32.totalorder %s347, 1
        %s349 = scalar_select %p348, %s347, 1
        %s350 = smul.addr %s349, 8
        %s351 = scalar_lea.vmem %s0, %s350
        %p352 = pneg %p53
        %p353 = pneg %p50
        %p354 = scmp.lt.s32.totalorder %s25, 1
        %s355 = scalar_select %p354, %s25, 1
        %s356 = smul.addr %s355, 4
        %s357 = smul.addr %s356, 4
        %s358 = scalar_lea.vmem %s1, %s357
        %p359 = pneg %p79
        %p360 = pneg %p76
        %p361 = scmp.lt.s32.totalorder %s25, 1
        %s362 = scalar_select %p361, %s25, 1
        %s363 = smul.addr %s362, 4
        %s364 = smul.addr %s363, 4
        %s365 = scalar_lea.vmem %s2, %s364
        %p366 = pneg %p105
        %p367 = pneg %p102
        %p368 = scmp.lt.s32.totalorder %s25, 1
        %s369 = scalar_select %p368, %s25, 1
        %s370 = smul.addr %s369, 4
        %s371 = smul.addr %s370, 4
        %s372 = scalar_lea.vmem %s3, %s371
        %p373 = pneg %p131
        %p374 = pneg %p128
        %p375 = scmp.lt.s32.totalorder %s25, 1
        %s376 = scalar_select %p375, %s25, 1
        %s377 = smul.addr %s376, 16
        %s378 = smul.addr %s377, 4
        %s379 = scalar_lea.vmem %s4, %s378
        %p380 = pneg %p157
        %p381 = pneg %p154
        %p382 = scmp.lt.s32.totalorder %s25, 1
        %s383 = scalar_select %p382, %s25, 1
        %s384 = scalar_lea.vmem %s5, %s383
        %p385 = pneg %p183
        %p386 = pneg %p180
        %p387 = scmp.lt.s32.totalorder %s25, 1
        %s388 = scalar_select %p387, %s25, 1
        %s389 = scalar_lea.vmem %s6, %s388
        %p390 = pneg %p209
        %p391 = pneg %p206
        %p392 = scmp.lt.s32.totalorder %s25, 1
        %s393 = scalar_select %p392, %s25, 1
        %s394 = smul.addr %s393, 8
        %s395 = scalar_lea.vmem %s7, %s394
        %p396 = pneg %p235
        %p397 = pneg %p232
        %p398 = pneg %p261
        %p399 = pneg %p258
        %s400 = smul.u32 2, %s24
        %p401 = scmp.lt.s32.totalorder %s400, 1
        %s402 = scalar_select %p401, %s400, 1
        %s403 = smul.addr %s402, 8
        %s404 = scalar_lea.vmem %s0, %s403
        %s405 = smul.u32 2, %s24
        %p406 = scmp.lt.s32.totalorder %s25, 1
        %s407 = scalar_select %p406, %s25, 1
        %s408 = smul.addr %s407, 4
        %s409 = smul.addr %s408, 4
        %s410 = scalar_lea.vmem %s1, %s409
        %p411 = scmp.lt.s32.totalorder %s25, 1
        %s412 = scalar_select %p411, %s25, 1
        %s413 = smul.addr %s412, 4
        %s414 = smul.addr %s413, 4
        %s415 = scalar_lea.vmem %s2, %s414
        %p416 = scmp.lt.s32.totalorder %s25, 1
        %s417 = scalar_select %p416, %s25, 1
        %s418 = smul.addr %s417, 4
        %s419 = smul.addr %s418, 4
        %s420 = scalar_lea.vmem %s3, %s419
        %p421 = scmp.lt.s32.totalorder %s25, 1
        %s422 = scalar_select %p421, %s25, 1
        %s423 = smul.addr %s422, 16
        %s424 = smul.addr %s423, 4
        %s425 = scalar_lea.vmem %s4, %s424
        %p426 = scmp.lt.s32.totalorder %s25, 1
        %s427 = scalar_select %p426, %s25, 1
        %s428 = scalar_lea.vmem %s5, %s427
        %p429 = scmp.lt.s32.totalorder %s25, 1
        %s430 = scalar_select %p429, %s25, 1
        %s431 = scalar_lea.vmem %s6, %s430
        %p432 = scmp.lt.s32.totalorder %s25, 1
        %s433 = scalar_select %p432, %s25, 1
        %s434 = smul.addr %s433, 8
        %s435 = scalar_lea.vmem %s7, %s434
        %p437 = scmp.eq.s32.totalorder %s25, 0
        // Predicated region
        $region53: #{tpu_custom_call.1} parent=51 // pred_check
          %p438 = pneg %p437
        $region54: #{tpu_custom_call.1} parent=51 // pred_check_branch
          %440 = sbr.rel (%p438) target = $region56
        $region55: #{tpu_custom_call.1} parent=51 // pred_region
          %v441 = vld [vmem:[%s404] sm:$0xff]
          %v442 = vld [vmem:[%s404 + $0x8] sm:$0xff]
          %vm443 = vcmask 261120
          %444 = vst.msk [vmem:[#allocation2] sm:$0xff] %vm443, %v441
          %445 = vst.msk [vmem:[#allocation2 + $0x8] sm:$0xff] %vm443, %v442
        $region56: #{tpu_custom_call.1} parent=51 // pred_fallthru
          _
        %v446 = vld [vmem:[#allocation2] sm:$0xff]
        %v447 = vld [vmem:[#allocation2 + $0x8] sm:$0xff]
        %v448 = vld [vmem:[%s410] sm:$0xf]
        %v449 = vld [vmem:[%s410 + $0x4] sm:$0xf]
        %v450 = vld [vmem:[%s410 + $0x8] sm:$0xf]
        %v451 = vld [vmem:[%s410 + $0xc] sm:$0xf]
        %v452 = vld [vmem:[%s415] sm:$0xf]
        %v453 = vld [vmem:[%s415 + $0x4] sm:$0xf]
        %v454 = vld [vmem:[%s415 + $0x8] sm:$0xf]
        %v455 = vld [vmem:[%s415 + $0xc] sm:$0xf]
        %v456 = vld [vmem:[%s420] sm:$0xf]
        %v457 = vld [vmem:[%s420 + $0x4] sm:$0xf]
        %v458 = vld [vmem:[%s420 + $0x8] sm:$0xf]
        %v459 = vld [vmem:[%s420 + $0xc] sm:$0xf]
        %v460 = vld [vmem:[%s425] sm:$0xf]
        %v461 = vld [vmem:[%s425 + $0x4] sm:$0xf]
        %v462 = vld [vmem:[%s425 + $0x8] sm:$0xf]
        %v463 = vld [vmem:[%s425 + $0xc] sm:$0xf]
        %v464 = vld [vmem:[%s425 + $0x10] sm:$0xf]
        %v465 = vld [vmem:[%s425 + $0x14] sm:$0xf]
        %v466 = vld [vmem:[%s425 + $0x18] sm:$0xf]
        %v467 = vld [vmem:[%s425 + $0x1c] sm:$0xf]
        %v468 = vld [vmem:[%s425 + $0x20] sm:$0xf]
        %v469 = vld [vmem:[%s425 + $0x24] sm:$0xf]
        %v470 = vld [vmem:[%s425 + $0x28] sm:$0xf]
        %v471 = vld [vmem:[%s425 + $0x2c] sm:$0xf]
        %v472 = vld [vmem:[%s425 + $0x30] sm:$0xf]
        %v473 = vld [vmem:[%s425 + $0x34] sm:$0xf]
        %v474 = vld [vmem:[%s425 + $0x38] sm:$0xf]
        %v475 = vld [vmem:[%s425 + $0x3c] sm:$0xf]
        %v476 = vld [vmem:[%s435] sm:$0x3f]
        %v477 = vpack.c.bf16 %v447, %v446
        %v478 = vld [vmem:[%s428] sm:$0x1]
        %v480 = vlaneseq
        %v481 = vshrl.u32 %v480, 7
        %v482 = vsub.s32 0, %v481
        %v483 = vrot.slane %v478, %v482
        %v489 = vunpack.c.l.b16 %v448
        %v490 = vunpack.c.l.b16 %v449
        %v491 = vunpack.c.l.b16 %v450
        %v492 = vunpack.c.l.b16 %v451
        %v493 = vpack.c.b16 %v490, %v489
        %v494 = vpack.c.b16 %v492, %v491
        %vm497 = vcmask 261120
        %v499 = vsel %vm497, %v477, 0
        %501 = vmatprep.subr.bf16.mxu0 0
        %502 = vmatpush1.bf16.msra.mxu0 0
        %503 = vmatprep.subr.bf16.mxu0 0
        %504 = vmatpush1.bf16.msra.mxu0 0
        %505 = vmatprep.subr.bf16.mxu0 0
        %506 = vmatpush1.bf16.msra.mxu0 0
        %507 = vmatprep.subr.bf16.mxu0 0
        %508 = vmatpush1.bf16.msra.mxu0 0
        %509 = vmatprep.subr.bf16.mxu0 0
        %510 = vmatpush1.bf16.msra.mxu0 0
        %511 = vmatprep.subr.bf16.mxu0 0
        %512 = vmatpush1.bf16.msra.mxu0 0
        %513 = vmatprep.subr.bf16.mxu0 0
        %514 = vmatpush1.bf16.msra.mxu0 %v494
        %515 = vmatprep.subr.bf16.mxu0 0
        %516 = vmatpush1.bf16.msra.mxu0 %v493
        %517 = vmatprep.subr.bf16.mxu0 0
        %518 = vmatpush2.bf16.msra.mxu0 0
        %519 = vmatprep.subr.bf16.mxu0 0
        %520 = vmatpush2.bf16.msra.mxu0 0
        %521 = vmatprep.subr.bf16.mxu0 0
        %522 = vmatpush2.bf16.msra.mxu0 0
        %523 = vmatprep.subr.bf16.mxu0 0
        %524 = vmatpush2.bf16.msra.mxu0 0
        %525 = vmatprep.subr.bf16.mxu0 0
        %526 = vmatpush2.bf16.msra.mxu0 0
        %527 = vmatprep.subr.bf16.mxu0 0
        %528 = vmatpush2.bf16.msra.mxu0 0
        %529 = vmatprep.subr.bf16.mxu0 0
        %530 = vmatpush2.bf16.msra.mxu0 0
        %531 = vmatprep.subr.bf16.mxu0 0
        %532 = vmatpush2.bf16.msra.mxu0 0
        %533 = vmatprep.mubr.bf16.mxu0 0
        %534 = vmatmul.mubr.bf16.gmra.mxu0 %v499
        %v535 = vpop.f32.mrf.mxu0
        %v536 = vadd.f32 %v483, %v535
        %v537 = vpop.f32.mrf.mxu0
        %v538 = vpop.f32.mrf.mxu0
        %v539 = vadd.f32 %v483, %v538
        %v540 = vpop.f32.mrf.mxu0
        %541 = vdwg.mxu0
        %v542 = vpack.c.bf16 %v539, %v536
        %v544 = vunpack.c.l.b16 %v542
        %v545 = vunpack.c.h.b16 %v542
        %v546 = vpack.c.b16 %v544, %v544
        %v547 = vpack.c.b16 %v545, %v545
        %548 = vrot.lane.b32.xlu0 %v546, 96
        %v549 = vpop.permute.xlu0 %548
        %vm550 = vcmask 64512
        %v552 = vsel %vm550, %v546, 0
        %v555 = vsel %vm550, %v549, 0
        %557 = vmatprep.subr.bf16.mxu0 0
        %558 = vmatpush1.bf16.xpose.msra.mxu0 0
        %559 = vmatprep.subr.bf16.mxu0 0
        %560 = vmatpush1.bf16.xpose.msra.mxu0 0
        %561 = vmatprep.subr.bf16.mxu0 0
        %562 = vmatpush1.bf16.xpose.msra.mxu0 0
        %563 = vmatprep.subr.bf16.mxu0 0
        %564 = vmatpush1.bf16.xpose.msra.mxu0 0
        %565 = vmatprep.subr.bf16.mxu0 0
        %566 = vmatpush1.bf16.xpose.msra.mxu0 0
        %567 = vmatprep.subr.bf16.mxu0 0
        %568 = vmatpush1.bf16.xpose.msra.mxu0 0
        %569 = vmatprep.subr.bf16.mxu0 0
        %570 = vmatpush1.bf16.xpose.msra.mxu0 0
        %571 = vmatprep.subr.bf16.mxu0 0
        %572 = vmatpush1.bf16.xpose.msra.mxu0 %v555
        %573 = vmatprep.subr.bf16.mxu0 0
        %574 = vmatpush2.bf16.xpose.msra.mxu0 0
        %575 = vmatprep.subr.bf16.mxu0 0
        %576 = vmatpush2.bf16.xpose.msra.mxu0 0
        %577 = vmatprep.subr.bf16.mxu0 0
        %578 = vmatpush2.bf16.xpose.msra.mxu0 0
        %579 = vmatprep.subr.bf16.mxu0 0
        %580 = vmatpush2.bf16.xpose.msra.mxu0 0
        %581 = vmatprep.subr.bf16.mxu0 0
        %582 = vmatpush2.bf16.xpose.msra.mxu0 0
        %583 = vmatprep.subr.bf16.mxu0 0
        %584 = vmatpush2.bf16.xpose.msra.mxu0 0
        %585 = vmatprep.subr.bf16.mxu0 0
        %586 = vmatpush2.bf16.xpose.msra.mxu0 0
        %587 = vmatprep.subr.bf16.mxu0 0
        %588 = vmatpush2.bf16.xpose.msra.mxu0 0
        %589 = vmatprep.mubr.bf16.mxu0 0
        %590 = vmatmul.mubr.bf16.gmra.mxu0 %v552
        %v591 = vpop.f32.mrf.mxu0
        %v592 = vadd.f32 0.0, %v591
        %v593 = vpop.f32.mrf.mxu0
        %v594 = vpop.f32.mrf.mxu0
        %v595 = vpop.f32.mrf.mxu0
        %596 = vdwg.mxu0
        %597 = vrot.lane.b32.xlu0 %v547, 96
        %v598 = vpop.permute.xlu0 %597
        %v600 = vsel %vm550, %v547, 0
        %v603 = vsel %vm550, %v598, 0
        %605 = vmatprep.subr.bf16.mxu0 0
        %606 = vmatpush1.bf16.xpose.msra.mxu0 0
        %607 = vmatprep.subr.bf16.mxu0 0
        %608 = vmatpush1.bf16.xpose.msra.mxu0 0
        %609 = vmatprep.subr.bf16.mxu0 0
        %610 = vmatpush1.bf16.xpose.msra.mxu0 0
        %611 = vmatprep.subr.bf16.mxu0 0
        %612 = vmatpush1.bf16.xpose.msra.mxu0 0
        %613 = vmatprep.subr.bf16.mxu0 0
        %614 = vmatpush1.bf16.xpose.msra.mxu0 0
        %615 = vmatprep.subr.bf16.mxu0 0
        %616 = vmatpush1.bf16.xpose.msra.mxu0 0
        %617 = vmatprep.subr.bf16.mxu0 0
        %618 = vmatpush1.bf16.xpose.msra.mxu0 0
        %619 = vmatprep.subr.bf16.mxu0 0
        %620 = vmatpush1.bf16.xpose.msra.mxu0 %v603
        %621 = vmatprep.subr.bf16.mxu0 0
        %622 = vmatpush2.bf16.xpose.msra.mxu0 0
        %623 = vmatprep.subr.bf16.mxu0 0
        %624 = vmatpush2.bf16.xpose.msra.mxu0 0
        %625 = vmatprep.subr.bf16.mxu0 0
        %626 = vmatpush2.bf16.xpose.msra.mxu0 0
        %627 = vmatprep.subr.bf16.mxu0 0
        %628 = vmatpush2.bf16.xpose.msra.mxu0 0
        %629 = vmatprep.subr.bf16.mxu0 0
        %630 = vmatpush2.bf16.xpose.msra.mxu0 0
        %631 = vmatprep.subr.bf16.mxu0 0
        %632 = vmatpush2.bf16.xpose.msra.mxu0 0
        %633 = vmatprep.subr.bf16.mxu0 0
        %634 = vmatpush2.bf16.xpose.msra.mxu0 0
        %635 = vmatprep.subr.bf16.mxu0 0
        %636 = vmatpush2.bf16.xpose.msra.mxu0 0
        %637 = vmatprep.mubr.bf16.mxu0 0
        %638 = vmatmul.mubr.bf16.gmra.mxu0 %v600
        %v639 = vpop.f32.mrf.mxu0
        %v640 = vadd.f32 0.0, %v639
        %v641 = vpop.f32.mrf.mxu0
        %v642 = vpop.f32.mrf.mxu0
        %v643 = vpop.f32.mrf.mxu0
        %644 = vdwg.mxu0
        %v645 = vsel %vm550, %v592, -inf
        %646 = vmax.xlane.f32.xlu0 %v645
        %v647 = vpop.xlane.xlu0 %646
        %v648 = vsel %vm550, %v640, -inf
        %649 = vmax.xlane.f32.xlu0 %v648
        %v650 = vpop.xlane.xlu0 %649
        %v651 = vsub.f32 %v592, %v647
        %v652 = vsub.f32 %v640, %v650
        %v653 = vmul.f32 %v651, 1.442695
        %v654 = vpow.pop %v653
        %v655 = vmul.f32 %v652, 1.442695
        %v656 = vpow.pop %v655
        %v657 = vsel %vm550, %v654, 0.0
        %658 = vadd.xlane.f32.xlu0 %v657
        %v659 = vpop.xlane.xlu0 %658
        %v660 = vsel %vm550, %v656, 0.0
        %661 = vadd.xlane.f32.xlu0 %v660
        %v662 = vpop.xlane.xlu0 %661
        %v663 = vrcp.pop %v659
        %v664 = vrcp.pop %v662
        %v665 = vmul.f32 %v654, %v663
        %v666 = vmul.f32 %v656, %v664
        %v667 = vpack.c.bf16 %v665, %v665
        %v668 = vpack.c.bf16 %v666, %v666
        %669 = vrot.lane.b32.xlu0 %v546, 64
        %v670 = vpop.permute.xlu0 %669
        %v672 = vsel %vm550, %v667, 0
        %vm674 = vcmask 1043456
        %v676 = vsel %vm674, %v670, 0
        %678 = vmatprep.subr.bf16.mxu0 0
        %679 = vmatpush1.bf16.msra.mxu0 0
        %680 = vmatprep.subr.bf16.mxu0 0
        %681 = vmatpush1.bf16.msra.mxu0 0
        %682 = vmatprep.subr.bf16.mxu0 0
        %683 = vmatpush1.bf16.msra.mxu0 0
        %684 = vmatprep.subr.bf16.mxu0 0
        %685 = vmatpush1.bf16.msra.mxu0 0
        %686 = vmatprep.subr.bf16.mxu0 0
        %687 = vmatpush1.bf16.msra.mxu0 0
        %688 = vmatprep.subr.bf16.mxu0 0
        %689 = vmatpush1.bf16.msra.mxu0 0
        %690 = vmatprep.subr.bf16.mxu0 0
        %691 = vmatpush1.bf16.msra.mxu0 0
        %692 = vmatprep.subr.bf16.mxu0 0
        %693 = vmatpush1.bf16.msra.mxu0 %v676
        %694 = vmatprep.subr.bf16.mxu0 0
        %695 = vmatpush2.bf16.msra.mxu0 0
        %696 = vmatprep.subr.bf16.mxu0 0
        %697 = vmatpush2.bf16.msra.mxu0 0
        %698 = vmatprep.subr.bf16.mxu0 0
        %699 = vmatpush2.bf16.msra.mxu0 0
        %700 = vmatprep.subr.bf16.mxu0 0
        %701 = vmatpush2.bf16.msra.mxu0 0
        %702 = vmatprep.subr.bf16.mxu0 0
        %703 = vmatpush2.bf16.msra.mxu0 0
        %704 = vmatprep.subr.bf16.mxu0 0
        %705 = vmatpush2.bf16.msra.mxu0 0
        %706 = vmatprep.subr.bf16.mxu0 0
        %707 = vmatpush2.bf16.msra.mxu0 0
        %708 = vmatprep.subr.bf16.mxu0 0
        %709 = vmatpush2.bf16.msra.mxu0 0
        %710 = vmatprep.mubr.bf16.mxu0 0
        %711 = vmatmul.mubr.bf16.gmra.mxu0 %v672
        %v712 = vpop.f32.mrf.mxu0
        %v713 = vadd.f32 0.0, %v712
        %v714 = vpop.f32.mrf.mxu0
        %v715 = vpop.f32.mrf.mxu0
        %v716 = vpop.f32.mrf.mxu0
        %717 = vdwg.mxu0
        %718 = vrot.lane.b32.xlu0 %v547, 64
        %v719 = vpop.permute.xlu0 %718
        %v721 = vsel %vm550, %v668, 0
        %v724 = vsel %vm674, %v719, 0
        %726 = vmatprep.subr.bf16.mxu0 0
        %727 = vmatpush1.bf16.msra.mxu0 0
        %728 = vmatprep.subr.bf16.mxu0 0
        %729 = vmatpush1.bf16.msra.mxu0 0
        %730 = vmatprep.subr.bf16.mxu0 0
        %731 = vmatpush1.bf16.msra.mxu0 0
        %732 = vmatprep.subr.bf16.mxu0 0
        %733 = vmatpush1.bf16.msra.mxu0 0
        %734 = vmatprep.subr.bf16.mxu0 0
        %735 = vmatpush1.bf16.msra.mxu0 0
        %736 = vmatprep.subr.bf16.mxu0 0
        %737 = vmatpush1.bf16.msra.mxu0 0
        %738 = vmatprep.subr.bf16.mxu0 0
        %739 = vmatpush1.bf16.msra.mxu0 0
        %740 = vmatprep.subr.bf16.mxu0 0
        %741 = vmatpush1.bf16.msra.mxu0 %v724
        %742 = vmatprep.subr.bf16.mxu0 0
        %743 = vmatpush2.bf16.msra.mxu0 0
        %744 = vmatprep.subr.bf16.mxu0 0
        %745 = vmatpush2.bf16.msra.mxu0 0
        %746 = vmatprep.subr.bf16.mxu0 0
        %747 = vmatpush2.bf16.msra.mxu0 0
        %748 = vmatprep.subr.bf16.mxu0 0
        %749 = vmatpush2.bf16.msra.mxu0 0
        %750 = vmatprep.subr.bf16.mxu0 0
        %751 = vmatpush2.bf16.msra.mxu0 0
        %752 = vmatprep.subr.bf16.mxu0 0
        %753 = vmatpush2.bf16.msra.mxu0 0
        %754 = vmatprep.subr.bf16.mxu0 0
        %755 = vmatpush2.bf16.msra.mxu0 0
        %756 = vmatprep.subr.bf16.mxu0 0
        %757 = vmatpush2.bf16.msra.mxu0 0
        %758 = vmatprep.mubr.bf16.mxu0 0
        %759 = vmatmul.mubr.bf16.gmra.mxu0 %v721
        %v760 = vpop.f32.mrf.mxu0
        %v761 = vadd.f32 0.0, %v760
        %v762 = vpop.f32.mrf.mxu0
        %v763 = vpop.f32.mrf.mxu0
        %v764 = vpop.f32.mrf.mxu0
        %765 = vdwg.mxu0
        %v766 = vpack.c.bf16 %v761, %v713
        %v768 = vunpack.c.l.b16 %v766
        %v769 = vunpack.c.h.b16 %v766
        %v770 = vpack.c.b16 %v768, %v768
        %v771 = vpack.c.b16 %v769, %v769
        %vm774 = vcmask 60416
        %775 = vst.msk [vmem:[#allocation3] sm:$0xf] %vm774, %v770
        %776 = vst.msk [vmem:[#allocation3 + $0x4] sm:$0xf] %vm774, %v771
        %777 = vrot.lane.b32.xlu0 %v546, 120
        %v778 = vpop.permute.xlu0 %777
        %779 = vrot.lane.b32.xlu0 %v546, 88
        %v780 = vpop.permute.xlu0 %779
        %v782 = vsel %vm550, %v778, 0
        %v785 = vsel %vm550, %v780, 0
        %787 = vmatprep.subr.bf16.mxu0 0
        %788 = vmatpush1.bf16.xpose.msra.mxu0 0
        %789 = vmatprep.subr.bf16.mxu0 0
        %790 = vmatpush1.bf16.xpose.msra.mxu0 0
        %791 = vmatprep.subr.bf16.mxu0 0
        %792 = vmatpush1.bf16.xpose.msra.mxu0 0
        %793 = vmatprep.subr.bf16.mxu0 0
        %794 = vmatpush1.bf16.xpose.msra.mxu0 0
        %795 = vmatprep.subr.bf16.mxu0 0
        %796 = vmatpush1.bf16.xpose.msra.mxu0 0
        %797 = vmatprep.subr.bf16.mxu0 0
        %798 = vmatpush1.bf16.xpose.msra.mxu0 0
        %799 = vmatprep.subr.bf16.mxu0 0
        %800 = vmatpush1.bf16.xpose.msra.mxu0 0
        %801 = vmatprep.subr.bf16.mxu0 0
        %802 = vmatpush1.bf16.xpose.msra.mxu0 %v785
        %803 = vmatprep.subr.bf16.mxu0 0
        %804 = vmatpush2.bf16.xpose.msra.mxu0 0
        %805 = vmatprep.subr.bf16.mxu0 0
        %806 = vmatpush2.bf16.xpose.msra.mxu0 0
        %807 = vmatprep.subr.bf16.mxu0 0
        %808 = vmatpush2.bf16.xpose.msra.mxu0 0
        %809 = vmatprep.subr.bf16.mxu0 0
        %810 = vmatpush2.bf16.xpose.msra.mxu0 0
        %811 = vmatprep.subr.bf16.mxu0 0
        %812 = vmatpush2.bf16.xpose.msra.mxu0 0
        %813 = vmatprep.subr.bf16.mxu0 0
        %814 = vmatpush2.bf16.xpose.msra.mxu0 0
        %815 = vmatprep.subr.bf16.mxu0 0
        %816 = vmatpush2.bf16.xpose.msra.mxu0 0
        %817 = vmatprep.subr.bf16.mxu0 0
        %818 = vmatpush2.bf16.xpose.msra.mxu0 0
        %819 = vmatprep.mubr.bf16.mxu0 0
        %820 = vmatmul.mubr.bf16.gmra.mxu0 %v782
        %v821 = vpop.f32.mrf.mxu0
        %v822 = vadd.f32 0.0, %v821
        %v823 = vpop.f32.mrf.mxu0
        %v824 = vpop.f32.mrf.mxu0
        %v825 = vpop.f32.mrf.mxu0
        %826 = vdwg.mxu0
        %827 = vrot.lane.b32.xlu0 %v547, 120
        %v828 = vpop.permute.xlu0 %827
        %829 = vrot.lane.b32.xlu0 %v547, 88
        %v830 = vpop.permute.xlu0 %829
        %v832 = vsel %vm550, %v828, 0
        %v835 = vsel %vm550, %v830, 0
        %837 = vmatprep.subr.bf16.mxu0 0
        %838 = vmatpush1.bf16.xpose.msra.mxu0 0
        %839 = vmatprep.subr.bf16.mxu0 0
        %840 = vmatpush1.bf16.xpose.msra.mxu0 0
        %841 = vmatprep.subr.bf16.mxu0 0
        %842 = vmatpush1.bf16.xpose.msra.mxu0 0
        %843 = vmatprep.subr.bf16.mxu0 0
        %844 = vmatpush1.bf16.xpose.msra.mxu0 0
        %845 = vmatprep.subr.bf16.mxu0 0
        %846 = vmatpush1.bf16.xpose.msra.mxu0 0
        %847 = vmatprep.subr.bf16.mxu0 0
        %848 = vmatpush1.bf16.xpose.msra.mxu0 0
        %849 = vmatprep.subr.bf16.mxu0 0
        %850 = vmatpush1.bf16.xpose.msra.mxu0 0
        %851 = vmatprep.subr.bf16.mxu0 0
        %852 = vmatpush1.bf16.xpose.msra.mxu0 %v835
        %853 = vmatprep.subr.bf16.mxu0 0
        %854 = vmatpush2.bf16.xpose.msra.mxu0 0
        %855 = vmatprep.subr.bf16.mxu0 0
        %856 = vmatpush2.bf16.xpose.msra.mxu0 0
        %857 = vmatprep.subr.bf16.mxu0 0
        %858 = vmatpush2.bf16.xpose.msra.mxu0 0
        %859 = vmatprep.subr.bf16.mxu0 0
        %860 = vmatpush2.bf16.xpose.msra.mxu0 0
        %861 = vmatprep.subr.bf16.mxu0 0
        %862 = vmatpush2.bf16.xpose.msra.mxu0 0
        %863 = vmatprep.subr.bf16.mxu0 0
        %864 = vmatpush2.bf16.xpose.msra.mxu0 0
        %865 = vmatprep.subr.bf16.mxu0 0
        %866 = vmatpush2.bf16.xpose.msra.mxu0 0
        %867 = vmatprep.subr.bf16.mxu0 0
        %868 = vmatpush2.bf16.xpose.msra.mxu0 0
        %869 = vmatprep.mubr.bf16.mxu0 0
        %870 = vmatmul.mubr.bf16.gmra.mxu0 %v832
        %v871 = vpop.f32.mrf.mxu0
        %v872 = vadd.f32 0.0, %v871
        %v873 = vpop.f32.mrf.mxu0
        %v874 = vpop.f32.mrf.mxu0
        %v875 = vpop.f32.mrf.mxu0
        %876 = vdwg.mxu0
        %v877 = vsel %vm550, %v822, -inf
        %878 = vmax.xlane.f32.xlu0 %v877
        %v879 = vpop.xlane.xlu0 %878
        %v880 = vsel %vm550, %v872, -inf
        %881 = vmax.xlane.f32.xlu0 %v880
        %v882 = vpop.xlane.xlu0 %881
        %v883 = vsub.f32 %v822, %v879
        %v884 = vsub.f32 %v872, %v882
        %v885 = vmul.f32 %v883, 1.442695
        %v886 = vpow.pop %v885
        %v887 = vmul.f32 %v884, 1.442695
        %v888 = vpow.pop %v887
        %v889 = vsel %vm550, %v886, 0.0
        %890 = vadd.xlane.f32.xlu0 %v889
        %v891 = vpop.xlane.xlu0 %890
        %v892 = vsel %vm550, %v888, 0.0
        %893 = vadd.xlane.f32.xlu0 %v892
        %v894 = vpop.xlane.xlu0 %893
        %v895 = vrcp.pop %v891
        %v896 = vrcp.pop %v894
        %v897 = vmul.f32 %v886, %v895
        %v898 = vmul.f32 %v888, %v896
        %v899 = vpack.c.bf16 %v897, %v897
        %v900 = vpack.c.bf16 %v898, %v898
        %901 = vrot.lane.b32.xlu0 %v546, 56
        %v902 = vpop.permute.xlu0 %901
        %v904 = vsel %vm550, %v899, 0
        %v907 = vsel %vm674, %v902, 0
        %909 = vmatprep.subr.bf16.mxu0 0
        %910 = vmatpush1.bf16.msra.mxu0 0
        %911 = vmatprep.subr.bf16.mxu0 0
        %912 = vmatpush1.bf16.msra.mxu0 0
        %913 = vmatprep.subr.bf16.mxu0 0
        %914 = vmatpush1.bf16.msra.mxu0 0
        %915 = vmatprep.subr.bf16.mxu0 0
        %916 = vmatpush1.bf16.msra.mxu0 0
        %917 = vmatprep.subr.bf16.mxu0 0
        %918 = vmatpush1.bf16.msra.mxu0 0
        %919 = vmatprep.subr.bf16.mxu0 0
        %920 = vmatpush1.bf16.msra.mxu0 0
        %921 = vmatprep.subr.bf16.mxu0 0
        %922 = vmatpush1.bf16.msra.mxu0 0
        %923 = vmatprep.subr.bf16.mxu0 0
        %924 = vmatpush1.bf16.msra.mxu0 %v907
        %925 = vmatprep.subr.bf16.mxu0 0
        %926 = vmatpush2.bf16.msra.mxu0 0
        %927 = vmatprep.subr.bf16.mxu0 0
        %928 = vmatpush2.bf16.msra.mxu0 0
        %929 = vmatprep.subr.bf16.mxu0 0
        %930 = vmatpush2.bf16.msra.mxu0 0
        %931 = vmatprep.subr.bf16.mxu0 0
        %932 = vmatpush2.bf16.msra.mxu0 0
        %933 = vmatprep.subr.bf16.mxu0 0
        %934 = vmatpush2.bf16.msra.mxu0 0
        %935 = vmatprep.subr.bf16.mxu0 0
        %936 = vmatpush2.bf16.msra.mxu0 0
        %937 = vmatprep.subr.bf16.mxu0 0
        %938 = vmatpush2.bf16.msra.mxu0 0
        %939 = vmatprep.subr.bf16.mxu0 0
        %940 = vmatpush2.bf16.msra.mxu0 0
        %941 = vmatprep.mubr.bf16.mxu0 0
        %942 = vmatmul.mubr.bf16.gmra.mxu0 %v904
        %v943 = vpop.f32.mrf.mxu0
        %v944 = vadd.f32 0.0, %v943
        %v945 = vpop.f32.mrf.mxu0
        %v946 = vpop.f32.mrf.mxu0
        %v947 = vpop.f32.mrf.mxu0
        %948 = vdwg.mxu0
        %949 = vrot.lane.b32.xlu0 %v547, 56
        %v950 = vpop.permute.xlu0 %949
        %v952 = vsel %vm550, %v900, 0
        %v955 = vsel %vm674, %v950, 0
        %957 = vmatprep.subr.bf16.mxu0 0
        %958 = vmatpush1.bf16.msra.mxu0 0
        %959 = vmatprep.subr.bf16.mxu0 0
        %960 = vmatpush1.bf16.msra.mxu0 0
        %961 = vmatprep.subr.bf16.mxu0 0
        %962 = vmatpush1.bf16.msra.mxu0 0
        %963 = vmatprep.subr.bf16.mxu0 0
        %964 = vmatpush1.bf16.msra.mxu0 0
        %965 = vmatprep.subr.bf16.mxu0 0
        %966 = vmatpush1.bf16.msra.mxu0 0
        %967 = vmatprep.subr.bf16.mxu0 0
        %968 = vmatpush1.bf16.msra.mxu0 0
        %969 = vmatprep.subr.bf16.mxu0 0
        %970 = vmatpush1.bf16.msra.mxu0 0
        %971 = vmatprep.subr.bf16.mxu0 0
        %972 = vmatpush1.bf16.msra.mxu0 %v955
        %973 = vmatprep.subr.bf16.mxu0 0
        %974 = vmatpush2.bf16.msra.mxu0 0
        %975 = vmatprep.subr.bf16.mxu0 0
        %976 = vmatpush2.bf16.msra.mxu0 0
        %977 = vmatprep.subr.bf16.mxu0 0
        %978 = vmatpush2.bf16.msra.mxu0 0
        %979 = vmatprep.subr.bf16.mxu0 0
        %980 = vmatpush2.bf16.msra.mxu0 0
        %981 = vmatprep.subr.bf16.mxu0 0
        %982 = vmatpush2.bf16.msra.mxu0 0
        %983 = vmatprep.subr.bf16.mxu0 0
        %984 = vmatpush2.bf16.msra.mxu0 0
        %985 = vmatprep.subr.bf16.mxu0 0
        %986 = vmatpush2.bf16.msra.mxu0 0
        %987 = vmatprep.subr.bf16.mxu0 0
        %988 = vmatpush2.bf16.msra.mxu0 0
        %989 = vmatprep.mubr.bf16.mxu0 0
        %990 = vmatmul.mubr.bf16.gmra.mxu0 %v952
        %v991 = vpop.f32.mrf.mxu0
        %v992 = vadd.f32 0.0, %v991
        %v993 = vpop.f32.mrf.mxu0
        %v994 = vpop.f32.mrf.mxu0
        %v995 = vpop.f32.mrf.mxu0
        %996 = vdwg.mxu0
        %v997 = vpack.c.bf16 %v992, %v944
        %v999 = vunpack.c.l.b16 %v997
        %v1000 = vunpack.c.h.b16 %v997
        %v1001 = vpack.c.b16 %v999, %v999
        %v1002 = vpack.c.b16 %v1000, %v1000
        %1003 = vrot.lane.b32.xlu0 %v1001, 8
        %v1004 = vpop.permute.xlu0 %1003
        %1005 = vrot.lane.b32.xlu0 %v1002, 8
        %v1006 = vpop.permute.xlu0 %1005
        %vm1009 = vcmask 126016
        %1010 = vst.msk [vmem:[#allocation3] sm:$0xf] %vm1009, %v1004
        %1011 = vst.msk [vmem:[#allocation3 + $0x4] sm:$0xf] %vm1009, %v1006
        %1012 = vrot.lane.b32.xlu0 %v546, 112
        %v1013 = vpop.permute.xlu0 %1012
        %1014 = vrot.lane.b32.xlu0 %v546, 80
        %v1015 = vpop.permute.xlu0 %1014
        %v1017 = vsel %vm550, %v1013, 0
        %v1020 = vsel %vm550, %v1015, 0
        %1022 = vmatprep.subr.bf16.mxu0 0
        %1023 = vmatpush1.bf16.xpose.msra.mxu0 0
        %1024 = vmatprep.subr.bf16.mxu0 0
        %1025 = vmatpush1.bf16.xpose.msra.mxu0 0
        %1026 = vmatprep.subr.bf16.mxu0 0
        %1027 = vmatpush1.bf16.xpose.msra.mxu0 0
        %1028 = vmatprep.subr.bf16.mxu0 0
        %1029 = vmatpush1.bf16.xpose.msra.mxu0 0
        %1030 = vmatprep.subr.bf16.mxu0 0
        %1031 = vmatpush1.bf16.xpose.msra.mxu0 0
        %1032 = vmatprep.subr.bf16.mxu0 0
        %1033 = vmatpush1.bf16.xpose.msra.mxu0 0
        %1034 = vmatprep.subr.bf16.mxu0 0
        %1035 = vmatpush1.bf16.xpose.msra.mxu0 0
        %1036 = vmatprep.subr.bf16.mxu0 0
        %1037 = vmatpush1.bf16.xpose.msra.mxu0 %v1020
        %1038 = vmatprep.subr.bf16.mxu0 0
        %1039 = vmatpush2.bf16.xpose.msra.mxu0 0
        %1040 = vmatprep.subr.bf16.mxu0 0
        %1041 = vmatpush2.bf16.xpose.msra.mxu0 0
        %1042 = vmatprep.subr.bf16.mxu0 0
        %1043 = vmatpush2.bf16.xpose.msra.mxu0 0
        %1044 = vmatprep.subr.bf16.mxu0 0
        %1045 = vmatpush2.bf16.xpose.msra.mxu0 0
        %1046 = vmatprep.subr.bf16.mxu0 0
        %1047 = vmatpush2.bf16.xpose.msra.mxu0 0
        %1048 = vmatprep.subr.bf16.mxu0 0
        %1049 = vmatpush2.bf16.xpose.msra.mxu0 0
        %1050 = vmatprep.subr.bf16.mxu0 0
        %1051 = vmatpush2.bf16.xpose.msra.mxu0 0
        %1052 = vmatprep.subr.bf16.mxu0 0
        %1053 = vmatpush2.bf16.xpose.msra.mxu0 0
        %1054 = vmatprep.mubr.bf16.mxu0 0
        %1055 = vmatmul.mubr.bf16.gmra.mxu0 %v1017
        %v1056 = vpop.f32.mrf.mxu0
        %v1057 = vadd.f32 0.0, %v1056
        %v1058 = vpop.f32.mrf.mxu0
        %v1059 = vpop.f32.mrf.mxu0
        %v1060 = vpop.f32.mrf.mxu0
        %1061 = vdwg.mxu0
        %1062 = vrot.lane.b32.xlu0 %v547, 112
        %v1063 = vpop.permute.xlu0 %1062
        %1064 = vrot.lane.b32.xlu0 %v547, 80
        %v1065 = vpop.permute.xlu0 %1064
        %v1067 = vsel %vm550, %v1063, 0
        %v1070 = vsel %vm550, %v1065, 0
        %1072 = vmatprep.subr.bf16.mxu0 0
        %1073 = vmatpush1.bf16.xpose.msra.mxu0 0
        %1074 = vmatprep.subr.bf16.mxu0 0
        %1075 = vmatpush1.bf16.xpose.msra.mxu0 0
        %1076 = vmatprep.subr.bf16.mxu0 0
        %1077 = vmatpush1.bf16.xpose.msra.mxu0 0
        %1078 = vmatprep.subr.bf16.mxu0 0
        %1079 = vmatpush1.bf16.xpose.msra.mxu0 0
        %1080 = vmatprep.subr.bf16.mxu0 0
        %1081 = vmatpush1.bf16.xpose.msra.mxu0 0
        %1082 = vmatprep.subr.bf16.mxu0 0
        %1083 = vmatpush1.bf16.xpose.msra.mxu0 0
        %1084 = vmatprep.subr.bf16.mxu0 0
        %1085 = vmatpush1.bf16.xpose.msra.mxu0 0
        %1086 = vmatprep.subr.bf16.mxu0 0
        %1087 = vmatpush1.bf16.xpose.msra.mxu0 %v1070
        %1088 = vmatprep.subr.bf16.mxu0 0
        %1089 = vmatpush2.bf16.xpose.msra.mxu0 0
        %1090 = vmatprep.subr.bf16.mxu0 0
        %1091 = vmatpush2.bf16.xpose.msra.mxu0 0
        %1092 = vmatprep.subr.bf16.mxu0 0
        %1093 = vmatpush2.bf16.xpose.msra.mxu0 0
        %1094 = vmatprep.subr.bf16.mxu0 0
        %1095 = vmatpush2.bf16.xpose.msra.mxu0 0
        %1096 = vmatprep.subr.bf16.mxu0 0
        %1097 = vmatpush2.bf16.xpose.msra.mxu0 0
        %1098 = vmatprep.subr.bf16.mxu0 0
        %1099 = vmatpush2.bf16.xpose.msra.mxu0 0
        %1100 = vmatprep.subr.bf16.mxu0 0
        %1101 = vmatpush2.bf16.xpose.msra.mxu0 0
        %1102 = vmatprep.subr.bf16.mxu0 0
        %1103 = vmatpush2.bf16.xpose.msra.mxu0 0
        %1104 = vmatprep.mubr.bf16.mxu0 0
        %1105 = vmatmul.mubr.bf16.gmra.mxu0 %v1067
        %v1106 = vpop.f32.mrf.mxu0
        %v1107 = vadd.f32 0.0, %v1106
        %v1108 = vpop.f32.mrf.mxu0
        %v1109 = vpop.f32.mrf.mxu0
        %v1110 = vpop.f32.mrf.mxu0
        %1111 = vdwg.mxu0
        %v1112 = vsel %vm550, %v1057, -inf
        %1113 = vmax.xlane.f32.xlu0 %v1112
        %v1114 = vpop.xlane.xlu0 %1113
        %v1115 = vsel %vm550, %v1107, -inf
        %1116 = vmax.xlane.f32.xlu0 %v1115
        %v1117 = vpop.xlane.xlu0 %1116
        %v1118 = vsub.f32 %v1057, %v1114
        %v1119 = vsub.f32 %v1107, %v1117
        %v1120 = vmul.f32 %v1118, 1.442695
        %v1121 = vpow.pop %v1120
        %v1122 = vmul.f32 %v1119, 1.442695
        %v1123 = vpow.pop %v1122
        %v1124 = vsel %vm550, %v1121, 0.0
        %1125 = vadd.xlane.f32.xlu0 %v1124
        %v1126 = vpop.xlane.xlu0 %1125
        %v1127 = vsel %vm550, %v1123, 0.0
        %1128 = vadd.xlane.f32.xlu0 %v1127
        %v1129 = vpop.xlane.xlu0 %1128
        %v1130 = vrcp.pop %v1126
        %v1131 = vrcp.pop %v1129
        %v1132 = vmul.f32 %v1121, %v1130
        %v1133 = vmul.f32 %v1123, %v1131
        %v1134 = vpack.c.bf16 %v1132, %v1132
        %v1135 = vpack.c.bf16 %v1133, %v1133
        %1136 = vrot.lane.b32.xlu0 %v546, 48
        %v1137 = vpop.permute.xlu0 %1136
        %v1139 = vsel %vm550, %v1134, 0
        %v1142 = vsel %vm674, %v1137, 0
        %1144 = vmatprep.subr.bf16.mxu0 0
        %1145 = vmatpush1.bf16.msra.mxu0 0
        %1146 = vmatprep.subr.bf16.mxu0 0
        %1147 = vmatpush1.bf16.msra.mxu0 0
        %1148 = vmatprep.subr.bf16.mxu0 0
        %1149 = vmatpush1.bf16.msra.mxu0 0
        %1150 = vmatprep.subr.bf16.mxu0 0
        %1151 = vmatpush1.bf16.msra.mxu0 0
        %1152 = vmatprep.subr.bf16.mxu0 0
        %1153 = vmatpush1.bf16.msra.mxu0 0
        %1154 = vmatprep.subr.bf16.mxu0 0
        %1155 = vmatpush1.bf16.msra.mxu0 0
        %1156 = vmatprep.subr.bf16.mxu0 0
        %1157 = vmatpush1.bf16.msra.mxu0 0
        %1158 = vmatprep.subr.bf16.mxu0 0
        %1159 = vmatpush1.bf16.msra.mxu0 %v1142
        %1160 = vmatprep.subr.bf16.mxu0 0
        %1161 = vmatpush2.bf16.msra.mxu0 0
        %1162 = vmatprep.subr.bf16.mxu0 0
        %1163 = vmatpush2.bf16.msra.mxu0 0
        %1164 = vmatprep.subr.bf16.mxu0 0
        %1165 = vmatpush2.bf16.msra.mxu0 0
        %1166 = vmatprep.subr.bf16.mxu0 0
        %1167 = vmatpush2.bf16.msra.mxu0 0
        %1168 = vmatprep.subr.bf16.mxu0 0
        %1169 = vmatpush2.bf16.msra.mxu0 0
        %1170 = vmatprep.subr.bf16.mxu0 0
        %1171 = vmatpush2.bf16.msra.mxu0 0
        %1172 = vmatprep.subr.bf16.mxu0 0
        %1173 = vmatpush2.bf16.msra.mxu0 0
        %1174 = vmatprep.subr.bf16.mxu0 0
        %1175 = vmatpush2.bf16.msra.mxu0 0
        %1176 = vmatprep.mubr.bf16.mxu0 0
        %1177 = vmatmul.mubr.bf16.gmra.mxu0 %v1139
        %v1178 = vpop.f32.mrf.mxu0
        %v1179 = vadd.f32 0.0, %v1178
        %v1180 = vpop.f32.mrf.mxu0
        %v1181 = vpop.f32.mrf.mxu0
        %v1182 = vpop.f32.mrf.mxu0
        %1183 = vdwg.mxu0
        %1184 = vrot.lane.b32.xlu0 %v547, 48
        %v1185 = vpop.permute.xlu0 %1184
        %v1187 = vsel %vm550, %v1135, 0
        %v1190 = vsel %vm674, %v1185, 0
        %1192 = vmatprep.subr.bf16.mxu0 0
        %1193 = vmatpush1.bf16.msra.mxu0 0
        %1194 = vmatprep.subr.bf16.mxu0 0
        %1195 = vmatpush1.bf16.msra.mxu0 0
        %1196 = vmatprep.subr.bf16.mxu0 0
        %1197 = vmatpush1.bf16.msra.mxu0 0
        %1198 = vmatprep.subr.bf16.mxu0 0
        %1199 = vmatpush1.bf16.msra.mxu0 0
        %1200 = vmatprep.subr.bf16.mxu0 0
        %1201 = vmatpush1.bf16.msra.mxu0 0
        %1202 = vmatprep.subr.bf16.mxu0 0
        %1203 = vmatpush1.bf16.msra.mxu0 0
        %1204 = vmatprep.subr.bf16.mxu0 0
        %1205 = vmatpush1.bf16.msra.mxu0 0
        %1206 = vmatprep.subr.bf16.mxu0 0
        %1207 = vmatpush1.bf16.msra.mxu0 %v1190
        %1208 = vmatprep.subr.bf16.mxu0 0
        %1209 = vmatpush2.bf16.msra.mxu0 0
        %1210 = vmatprep.subr.bf16.mxu0 0
        %1211 = vmatpush2.bf16.msra.mxu0 0
        %1212 = vmatprep.subr.bf16.mxu0 0
        %1213 = vmatpush2.bf16.msra.mxu0 0
        %1214 = vmatprep.subr.bf16.mxu0 0
        %1215 = vmatpush2.bf16.msra.mxu0 0
        %1216 = vmatprep.subr.bf16.mxu0 0
        %1217 = vmatpush2.bf16.msra.mxu0 0
        %1218 = vmatprep.subr.bf16.mxu0 0
        %1219 = vmatpush2.bf16.msra.mxu0 0
        %1220 = vmatprep.subr.bf16.mxu0 0
        %1221 = vmatpush2.bf16.msra.mxu0 0
        %1222 = vmatprep.subr.bf16.mxu0 0
        %1223 = vmatpush2.bf16.msra.mxu0 0
        %1224 = vmatprep.mubr.bf16.mxu0 0
        %1225 = vmatmul.mubr.bf16.gmra.mxu0 %v1187
        %v1226 = vpop.f32.mrf.mxu0
        %v1227 = vadd.f32 0.0, %v1226
        %v1228 = vpop.f32.mrf.mxu0
        %v1229 = vpop.f32.mrf.mxu0
        %v1230 = vpop.f32.mrf.mxu0
        %1231 = vdwg.mxu0
        %v1232 = vpack.c.bf16 %v1227, %v1179
        %v1234 = vunpack.c.l.b16 %v1232
        %v1235 = vunpack.c.h.b16 %v1232
        %v1236 = vpack.c.b16 %v1234, %v1234
        %v1237 = vpack.c.b16 %v1235, %v1235
        %1238 = vrot.lane.b32.xlu0 %v1236, 16
        %v1239 = vpop.permute.xlu0 %1238
        %1240 = vrot.lane.b32.xlu0 %v1237, 16
        %v1241 = vpop.permute.xlu0 %1240
        %vm1244 = vcmask 191616
        %1245 = vst.msk [vmem:[#allocation3] sm:$0xf] %vm1244, %v1239
        %1246 = vst.msk [vmem:[#allocation3 + $0x4] sm:$0xf] %vm1244, %v1241
        %1247 = vrot.lane.b32.xlu0 %v546, 104
        %v1248 = vpop.permute.xlu0 %1247
        %1249 = vrot.lane.b32.xlu0 %v546, 72
        %v1250 = vpop.permute.xlu0 %1249
        %v1252 = vsel %vm550, %v1248, 0
        %v1255 = vsel %vm550, %v1250, 0
        %1257 = vmatprep.subr.bf16.mxu0 0
        %1258 = vmatpush1.bf16.xpose.msra.mxu0 0
        %1259 = vmatprep.subr.bf16.mxu0 0
        %1260 = vmatpush1.bf16.xpose.msra.mxu0 0
        %1261 = vmatprep.subr.bf16.mxu0 0
        %1262 = vmatpush1.bf16.xpose.msra.mxu0 0
        %1263 = vmatprep.subr.bf16.mxu0 0
        %1264 = vmatpush1.bf16.xpose.msra.mxu0 0
        %1265 = vmatprep.subr.bf16.mxu0 0
        %1266 = vmatpush1.bf16.xpose.msra.mxu0 0
        %1267 = vmatprep.subr.bf16.mxu0 0
        %1268 = vmatpush1.bf16.xpose.msra.mxu0 0
        %1269 = vmatprep.subr.bf16.mxu0 0
        %1270 = vmatpush1.bf16.xpose.msra.mxu0 0
        %1271 = vmatprep.subr.bf16.mxu0 0
        %1272 = vmatpush1.bf16.xpose.msra.mxu0 %v1255
        %1273 = vmatprep.subr.bf16.mxu0 0
        %1274 = vmatpush2.bf16.xpose.msra.mxu0 0
        %1275 = vmatprep.subr.bf16.mxu0 0
        %1276 = vmatpush2.bf16.xpose.msra.mxu0 0
        %1277 = vmatprep.subr.bf16.mxu0 0
        %1278 = vmatpush2.bf16.xpose.msra.mxu0 0
        %1279 = vmatprep.subr.bf16.mxu0 0
        %1280 = vmatpush2.bf16.xpose.msra.mxu0 0
        %1281 = vmatprep.subr.bf16.mxu0 0
        %1282 = vmatpush2.bf16.xpose.msra.mxu0 0
        %1283 = vmatprep.subr.bf16.mxu0 0
        %1284 = vmatpush2.bf16.xpose.msra.mxu0 0
        %1285 = vmatprep.subr.bf16.mxu0 0
        %1286 = vmatpush2.bf16.xpose.msra.mxu0 0
        %1287 = vmatprep.subr.bf16.mxu0 0
        %1288 = vmatpush2.bf16.xpose.msra.mxu0 0
        %1289 = vmatprep.mubr.bf16.mxu0 0
        %1290 = vmatmul.mubr.bf16.gmra.mxu0 %v1252
        %v1291 = vpop.f32.mrf.mxu0
        %v1292 = vadd.f32 0.0, %v1291
        %v1293 = vpop.f32.mrf.mxu0
        %v1294 = vpop.f32.mrf.mxu0
        %v1295 = vpop.f32.mrf.mxu0
        %1296 = vdwg.mxu0
        %1297 = vrot.lane.b32.xlu0 %v547, 104
        %v1298 = vpop.permute.xlu0 %1297
        %1299 = vrot.lane.b32.xlu0 %v547, 72
        %v1300 = vpop.permute.xlu0 %1299
        %v1302 = vsel %vm550, %v1298, 0
        %v1305 = vsel %vm550, %v1300, 0
        %1307 = vmatprep.subr.bf16.mxu0 0
        %1308 = vmatpush1.bf16.xpose.msra.mxu0 0
        %1309 = vmatprep.subr.bf16.mxu0 0
        %1310 = vmatpush1.bf16.xpose.msra.mxu0 0
        %1311 = vmatprep.subr.bf16.mxu0 0
        %1312 = vmatpush1.bf16.xpose.msra.mxu0 0
        %1313 = vmatprep.subr.bf16.mxu0 0
        %1314 = vmatpush1.bf16.xpose.msra.mxu0 0
        %1315 = vmatprep.subr.bf16.mxu0 0
        %1316 = vmatpush1.bf16.xpose.msra.mxu0 0
        %1317 = vmatprep.subr.bf16.mxu0 0
        %1318 = vmatpush1.bf16.xpose.msra.mxu0 0
        %1319 = vmatprep.subr.bf16.mxu0 0
        %1320 = vmatpush1.bf16.xpose.msra.mxu0 0
        %1321 = vmatprep.subr.bf16.mxu0 0
        %1322 = vmatpush1.bf16.xpose.msra.mxu0 %v1305
        %1323 = vmatprep.subr.bf16.mxu0 0
        %1324 = vmatpush2.bf16.xpose.msra.mxu0 0
        %1325 = vmatprep.subr.bf16.mxu0 0
        %1326 = vmatpush2.bf16.xpose.msra.mxu0 0
        %1327 = vmatprep.subr.bf16.mxu0 0
        %1328 = vmatpush2.bf16.xpose.msra.mxu0 0
        %1329 = vmatprep.subr.bf16.mxu0 0
        %1330 = vmatpush2.bf16.xpose.msra.mxu0 0
        %1331 = vmatprep.subr.bf16.mxu0 0
        %1332 = vmatpush2.bf16.xpose.msra.mxu0 0
        %1333 = vmatprep.subr.bf16.mxu0 0
        %1334 = vmatpush2.bf16.xpose.msra.mxu0 0
        %1335 = vmatprep.subr.bf16.mxu0 0
        %1336 = vmatpush2.bf16.xpose.msra.mxu0 0
        %1337 = vmatprep.subr.bf16.mxu0 0
        %1338 = vmatpush2.bf16.xpose.msra.mxu0 0
        %1339 = vmatprep.mubr.bf16.mxu0 0
        %1340 = vmatmul.mubr.bf16.gmra.mxu0 %v1302
        %v1341 = vpop.f32.mrf.mxu0
        %v1342 = vadd.f32 0.0, %v1341
        %v1343 = vpop.f32.mrf.mxu0
        %v1344 = vpop.f32.mrf.mxu0
        %v1345 = vpop.f32.mrf.mxu0
        %1346 = vdwg.mxu0
        %v1347 = vsel %vm550, %v1292, -inf
        %1348 = vmax.xlane.f32.xlu0 %v1347
        %v1349 = vpop.xlane.xlu0 %1348
        %v1350 = vsel %vm550, %v1342, -inf
        %1351 = vmax.xlane.f32.xlu0 %v1350
        %v1352 = vpop.xlane.xlu0 %1351
        %v1353 = vsub.f32 %v1292, %v1349
        %v1354 = vsub.f32 %v1342, %v1352
        %v1355 = vmul.f32 %v1353, 1.442695
        %v1356 = vpow.pop %v1355
        %v1357 = vmul.f32 %v1354, 1.442695
        %v1358 = vpow.pop %v1357
        %v1359 = vsel %vm550, %v1356, 0.0
        %1360 = vadd.xlane.f32.xlu0 %v1359
        %v1361 = vpop.xlane.xlu0 %1360
        %v1362 = vsel %vm550, %v1358, 0.0
        %1363 = vadd.xlane.f32.xlu0 %v1362
        %v1364 = vpop.xlane.xlu0 %1363
        %v1365 = vrcp.pop %v1361
        %v1366 = vrcp.pop %v1364
        %v1367 = vmul.f32 %v1356, %v1365
        %v1368 = vmul.f32 %v1358, %v1366
        %v1369 = vpack.c.bf16 %v1367, %v1367
        %v1370 = vpack.c.bf16 %v1368, %v1368
        %1371 = vrot.lane.b32.xlu0 %v546, 40
        %v1372 = vpop.permute.xlu0 %1371
        %v1374 = vsel %vm550, %v1369, 0
        %v1377 = vsel %vm674, %v1372, 0
        %1379 = vmatprep.subr.bf16.mxu0 0
        %1380 = vmatpush1.bf16.msra.mxu0 0
        %1381 = vmatprep.subr.bf16.mxu0 0
        %1382 = vmatpush1.bf16.msra.mxu0 0
        %1383 = vmatprep.subr.bf16.mxu0 0
        %1384 = vmatpush1.bf16.msra.mxu0 0
        %1385 = vmatprep.subr.bf16.mxu0 0
        %1386 = vmatpush1.bf16.msra.mxu0 0
        %1387 = vmatprep.subr.bf16.mxu0 0
        %1388 = vmatpush1.bf16.msra.mxu0 0
        %1389 = vmatprep.subr.bf16.mxu0 0
        %1390 = vmatpush1.bf16.msra.mxu0 0
        %1391 = vmatprep.subr.bf16.mxu0 0
        %1392 = vmatpush1.bf16.msra.mxu0 0
        %1393 = vmatprep.subr.bf16.mxu0 0
        %1394 = vmatpush1.bf16.msra.mxu0 %v1377
        %1395 = vmatprep.subr.bf16.mxu0 0
        %1396 = vmatpush2.bf16.msra.mxu0 0
        %1397 = vmatprep.subr.bf16.mxu0 0
        %1398 = vmatpush2.bf16.msra.mxu0 0
        %1399 = vmatprep.subr.bf16.mxu0 0
        %1400 = vmatpush2.bf16.msra.mxu0 0
        %1401 = vmatprep.subr.bf16.mxu0 0
        %1402 = vmatpush2.bf16.msra.mxu0 0
        %1403 = vmatprep.subr.bf16.mxu0 0
        %1404 = vmatpush2.bf16.msra.mxu0 0
        %1405 = vmatprep.subr.bf16.mxu0 0
        %1406 = vmatpush2.bf16.msra.mxu0 0
        %1407 = vmatprep.subr.bf16.mxu0 0
        %1408 = vmatpush2.bf16.msra.mxu0 0
        %1409 = vmatprep.subr.bf16.mxu0 0
        %1410 = vmatpush2.bf16.msra.mxu0 0
        %1411 = vmatprep.mubr.bf16.mxu0 0
        %1412 = vmatmul.mubr.bf16.gmra.mxu0 %v1374
        %v1413 = vpop.f32.mrf.mxu0
        %v1414 = vadd.f32 0.0, %v1413
        %v1415 = vpop.f32.mrf.mxu0
        %v1416 = vpop.f32.mrf.mxu0
        %v1417 = vpop.f32.mrf.mxu0
        %1418 = vdwg.mxu0
        %1419 = vrot.lane.b32.xlu0 %v547, 40
        %v1420 = vpop.permute.xlu0 %1419
        %v1422 = vsel %vm550, %v1370, 0
        %v1425 = vsel %vm674, %v1420, 0
        %1427 = vmatprep.subr.bf16.mxu0 0
        %1428 = vmatpush1.bf16.msra.mxu0 0
        %1429 = vmatprep.subr.bf16.mxu0 0
        %1430 = vmatpush1.bf16.msra.mxu0 0
        %1431 = vmatprep.subr.bf16.mxu0 0
        %1432 = vmatpush1.bf16.msra.mxu0 0
        %1433 = vmatprep.subr.bf16.mxu0 0
        %1434 = vmatpush1.bf16.msra.mxu0 0
        %1435 = vmatprep.subr.bf16.mxu0 0
        %1436 = vmatpush1.bf16.msra.mxu0 0
        %1437 = vmatprep.subr.bf16.mxu0 0
        %1438 = vmatpush1.bf16.msra.mxu0 0
        %1439 = vmatprep.subr.bf16.mxu0 0
        %1440 = vmatpush1.bf16.msra.mxu0 0
        %1441 = vmatprep.subr.bf16.mxu0 0
        %1442 = vmatpush1.bf16.msra.mxu0 %v1425
        %1443 = vmatprep.subr.bf16.mxu0 0
        %1444 = vmatpush2.bf16.msra.mxu0 0
        %1445 = vmatprep.subr.bf16.mxu0 0
        %1446 = vmatpush2.bf16.msra.mxu0 0
        %1447 = vmatprep.subr.bf16.mxu0 0
        %1448 = vmatpush2.bf16.msra.mxu0 0
        %1449 = vmatprep.subr.bf16.mxu0 0
        %1450 = vmatpush2.bf16.msra.mxu0 0
        %1451 = vmatprep.subr.bf16.mxu0 0
        %1452 = vmatpush2.bf16.msra.mxu0 0
        %1453 = vmatprep.subr.bf16.mxu0 0
        %1454 = vmatpush2.bf16.msra.mxu0 0
        %1455 = vmatprep.subr.bf16.mxu0 0
        %1456 = vmatpush2.bf16.msra.mxu0 0
        %1457 = vmatprep.subr.bf16.mxu0 0
        %1458 = vmatpush2.bf16.msra.mxu0 0
        %1459 = vmatprep.mubr.bf16.mxu0 0
        %1460 = vmatmul.mubr.bf16.gmra.mxu0 %v1422
        %v1461 = vpop.f32.mrf.mxu0
        %v1462 = vadd.f32 0.0, %v1461
        %v1463 = vpop.f32.mrf.mxu0
        %v1464 = vpop.f32.mrf.mxu0
        %v1465 = vpop.f32.mrf.mxu0
        %1466 = vdwg.mxu0
        %v1467 = vpack.c.bf16 %v1462, %v1414
        %v1469 = vunpack.c.l.b16 %v1467
        %v1470 = vunpack.c.h.b16 %v1467
        %v1471 = vpack.c.b16 %v1469, %v1469
        %v1472 = vpack.c.b16 %v1470, %v1470
        %1473 = vrot.lane.b32.xlu0 %v1471, 24
        %v1474 = vpop.permute.xlu0 %1473
        %1475 = vrot.lane.b32.xlu0 %v1472, 24
        %v1476 = vpop.permute.xlu0 %1475
        %vm1479 = vcmask 257216
        %1480 = vst.msk [vmem:[#allocation3] sm:$0xf] %vm1479, %v1474
        %1481 = vst.msk [vmem:[#allocation3 + $0x4] sm:$0xf] %vm1479, %v1476
        %v1482 = vld [vmem:[#allocation3] sm:$0xf]
        %v1483 = vld [vmem:[#allocation3 + $0x4] sm:$0xf]
        %v1484 = vlaneseq
        %v1485 = vshrl.u32 %v1484, 7
        %v1486 = vsub.s32 0, %v1485
        %v1487 = vrot.slane %v476, %v1486
        %v1490 = vunpack.c.l.b16 %v1482
        %v1491 = vunpack.c.l.b16 %v1483
        %v1492 = vpack.c.b16 %v1491, %v1490
        %v1497 = vunpack.c.l.b16 %v452
        %v1498 = vunpack.c.l.b16 %v453
        %v1499 = vunpack.c.l.b16 %v454
        %v1500 = vunpack.c.l.b16 %v455
        %v1501 = vpack.c.b16 %v1498, %v1497
        %v1502 = vpack.c.b16 %v1500, %v1499
        %v1506 = vsel %vm497, %v1492, 0
        %1508 = vmatprep.subr.bf16.mxu0 0
        %1509 = vmatpush1.bf16.msra.mxu0 0
        %1510 = vmatprep.subr.bf16.mxu0 0
        %1511 = vmatpush1.bf16.msra.mxu0 0
        %1512 = vmatprep.subr.bf16.mxu0 0
        %1513 = vmatpush1.bf16.msra.mxu0 0
        %1514 = vmatprep.subr.bf16.mxu0 0
        %1515 = vmatpush1.bf16.msra.mxu0 0
        %1516 = vmatprep.subr.bf16.mxu0 0
        %1517 = vmatpush1.bf16.msra.mxu0 0
        %1518 = vmatprep.subr.bf16.mxu0 0
        %1519 = vmatpush1.bf16.msra.mxu0 0
        %1520 = vmatprep.subr.bf16.mxu0 0
        %1521 = vmatpush1.bf16.msra.mxu0 %v1502
        %1522 = vmatprep.subr.bf16.mxu0 0
        %1523 = vmatpush1.bf16.msra.mxu0 %v1501
        %1524 = vmatprep.subr.bf16.mxu0 0
        %1525 = vmatpush2.bf16.msra.mxu0 0
        %1526 = vmatprep.subr.bf16.mxu0 0
        %1527 = vmatpush2.bf16.msra.mxu0 0
        %1528 = vmatprep.subr.bf16.mxu0 0
        %1529 = vmatpush2.bf16.msra.mxu0 0
        %1530 = vmatprep.subr.bf16.mxu0 0
        %1531 = vmatpush2.bf16.msra.mxu0 0
        %1532 = vmatprep.subr.bf16.mxu0 0
        %1533 = vmatpush2.bf16.msra.mxu0 0
        %1534 = vmatprep.subr.bf16.mxu0 0
        %1535 = vmatpush2.bf16.msra.mxu0 0
        %1536 = vmatprep.subr.bf16.mxu0 0
        %1537 = vmatpush2.bf16.msra.mxu0 0
        %1538 = vmatprep.subr.bf16.mxu0 0
        %1539 = vmatpush2.bf16.msra.mxu0 0
        %1540 = vmatprep.mubr.bf16.mxu0 0
        %1541 = vmatmul.mubr.bf16.gmra.mxu0 %v1506
        %v1542 = vpop.f32.mrf.mxu0
        %v1543 = vadd.f32 %v1487, %v1542
        %v1544 = vpop.f32.mrf.mxu0
        %v1545 = vpop.f32.mrf.mxu0
        %v1546 = vadd.f32 %v1487, %v1545
        %v1547 = vpop.f32.mrf.mxu0
        %1548 = vdwg.mxu0
        %v1549 = vadd.f32 %v446, %v1543
        %v1550 = vadd.f32 %v447, %v1546
        %v1551 = vsel %vm497, %v1549, 0.0
        %1552 = vadd.xlane.f32.xlu0 %v1551
        %v1553 = vpop.xlane.xlu0 %1552
        %v1554 = vsel %vm497, %v1550, 0.0
        %1555 = vadd.xlane.f32.xlu0 %v1554
        %v1556 = vpop.xlane.xlu0 %1555
        %v1557 = vrcp.pop 32.0
        %v1558 = vmul.f32 %v1553, %v1557
        %v1559 = vmul.f32 %v1556, %v1557
        %v1560 = vsub.f32 %v1549, %v1558
        %v1561 = vsub.f32 %v1550, %v1559
        %v1562 = vmul.f32 %v1560, %v1560
        %v1563 = vmul.f32 %v1561, %v1561
        %v1564 = vsel %vm497, %v1562, 0.0
        %1565 = vadd.xlane.f32.xlu0 %v1564
        %v1566 = vpop.xlane.xlu0 %1565
        %v1567 = vsel %vm497, %v1563, 0.0
        %1568 = vadd.xlane.f32.xlu0 %v1567
        %v1569 = vpop.xlane.xlu0 %1568
        %v1570 = vmul.f32 %v1566, %v1557
        %v1571 = vmul.f32 %v1569, %v1557
        %v1572 = vadd.f32 %v1570, 1e-05
        %v1573 = vadd.f32 %v1571, 1e-05
        %v1574 = vrsqrt.pop %v1572
        %v1575 = vrsqrt.pop %v1573
        %v1576 = vmul.f32 %v1560, %v1574
        %v1577 = vmul.f32 %v1561, %v1575
        %v1578 = vlaneseq
        %v1579 = vshrl.u32 %v1578, 7
        %v1580 = vsub.s32 1, %v1579
        %v1581 = vrot.slane %v476, %v1580
        %v1582 = vmul.f32 %v1576, %v1581
        %v1583 = vmul.f32 %v1577, %v1581
        %v1584 = vlaneseq
        %v1585 = vshrl.u32 %v1584, 7
        %v1586 = vsub.s32 2, %v1585
        %v1587 = vrot.slane %v476, %v1586
        %v1588 = vadd.f32 %v1582, %v1587
        %v1589 = vadd.f32 %v1583, %v1587
        %v1590 = vpack.c.bf16 %v1589, %v1588
        %v1591 = vld [vmem:[%s431] sm:$0x1]
        %v1593 = vlaneseq
        %v1594 = vshrl.u32 %v1593, 7
        %v1595 = vsub.s32 0, %v1594
        %v1596 = vrot.slane %v1591, %v1595
        %v1602 = vunpack.c.l.b16 %v456
        %v1603 = vunpack.c.l.b16 %v457
        %v1604 = vunpack.c.l.b16 %v458
        %v1605 = vunpack.c.l.b16 %v459
        %v1606 = vpack.c.b16 %v1603, %v1602
        %v1607 = vpack.c.b16 %v1605, %v1604
        %v1611 = vsel %vm497, %v1590, 0
        %1613 = vmatprep.subr.bf16.mxu0 0
        %1614 = vmatpush1.bf16.msra.mxu0 0
        %1615 = vmatprep.subr.bf16.mxu0 0
        %1616 = vmatpush1.bf16.msra.mxu0 0
        %1617 = vmatprep.subr.bf16.mxu0 0
        %1618 = vmatpush1.bf16.msra.mxu0 0
        %1619 = vmatprep.subr.bf16.mxu0 0
        %1620 = vmatpush1.bf16.msra.mxu0 0
        %1621 = vmatprep.subr.bf16.mxu0 0
        %1622 = vmatpush1.bf16.msra.mxu0 0
        %1623 = vmatprep.subr.bf16.mxu0 0
        %1624 = vmatpush1.bf16.msra.mxu0 0
        %1625 = vmatprep.subr.bf16.mxu0 0
        %1626 = vmatpush1.bf16.msra.mxu0 %v1607
        %1627 = vmatprep.subr.bf16.mxu0 0
        %1628 = vmatpush1.bf16.msra.mxu0 %v1606
        %1629 = vmatprep.subr.bf16.mxu0 0
        %1630 = vmatpush2.bf16.msra.mxu0 0
        %1631 = vmatprep.subr.bf16.mxu0 0
        %1632 = vmatpush2.bf16.msra.mxu0 0
        %1633 = vmatprep.subr.bf16.mxu0 0
        %1634 = vmatpush2.bf16.msra.mxu0 0
        %1635 = vmatprep.subr.bf16.mxu0 0
        %1636 = vmatpush2.bf16.msra.mxu0 0
        %1637 = vmatprep.subr.bf16.mxu0 0
        %1638 = vmatpush2.bf16.msra.mxu0 0
        %1639 = vmatprep.subr.bf16.mxu0 0
        %1640 = vmatpush2.bf16.msra.mxu0 0
        %1641 = vmatprep.subr.bf16.mxu0 0
        %1642 = vmatpush2.bf16.msra.mxu0 0
        %1643 = vmatprep.subr.bf16.mxu0 0
        %1644 = vmatpush2.bf16.msra.mxu0 0
        %1645 = vmatprep.mubr.bf16.mxu0 0
        %1646 = vmatmul.mubr.bf16.gmra.mxu0 %v1611
        %v1647 = vpop.f32.mrf.mxu0
        %v1648 = vadd.f32 %v1596, %v1647
        %v1649 = vpop.f32.mrf.mxu0
        %v1650 = vpop.f32.mrf.mxu0
        %v1651 = vadd.f32 %v1596, %v1650
        %v1652 = vpop.f32.mrf.mxu0
        %1653 = vdwg.mxu0
        %v1654 = vmax.f32 %v1648, 0.0
        %v1655 = vmax.f32 %v1651, 0.0
        %v1656 = vpack.c.bf16 %v1655, %v1654
        %v1657 = vlaneseq
        %v1658 = vshrl.u32 %v1657, 7
        %v1659 = vsub.s32 3, %v1658
        %v1660 = vrot.slane %v476, %v1659
        %v1677 = vunpack.c.l.b16 %v460
        %v1678 = vunpack.c.l.b16 %v461
        %v1679 = vunpack.c.l.b16 %v462
        %v1680 = vunpack.c.l.b16 %v463
        %v1681 = vunpack.c.l.b16 %v464
        %v1682 = vunpack.c.l.b16 %v465
        %v1683 = vunpack.c.l.b16 %v466
        %v1684 = vunpack.c.l.b16 %v467
        %v1685 = vunpack.c.l.b16 %v468
        %v1686 = vunpack.c.l.b16 %v469
        %v1687 = vunpack.c.l.b16 %v470
        %v1688 = vunpack.c.l.b16 %v471
        %v1689 = vunpack.c.l.b16 %v472
        %v1690 = vunpack.c.l.b16 %v473
        %v1691 = vunpack.c.l.b16 %v474
        %v1692 = vunpack.c.l.b16 %v475
        %v1693 = vpack.c.b16 %v1678, %v1677
        %v1694 = vpack.c.b16 %v1680, %v1679
        %v1695 = vpack.c.b16 %v1682, %v1681
        %v1696 = vpack.c.b16 %v1684, %v1683
        %v1697 = vpack.c.b16 %v1686, %v1685
        %v1698 = vpack.c.b16 %v1688, %v1687
        %v1699 = vpack.c.b16 %v1690, %v1689
        %v1700 = vpack.c.b16 %v1692, %v1691
        %1709 = vmatprep.subr.bf16.mxu0 0
        %1710 = vmatpush1.bf16.msra.mxu0 %v1700
        %1711 = vmatprep.subr.bf16.mxu0 0
        %1712 = vmatpush1.bf16.msra.mxu0 %v1699
        %1713 = vmatprep.subr.bf16.mxu0 0
        %1714 = vmatpush1.bf16.msra.mxu0 %v1698
        %1715 = vmatprep.subr.bf16.mxu0 0
        %1716 = vmatpush1.bf16.msra.mxu0 %v1697
        %1717 = vmatprep.subr.bf16.mxu0 0
        %1718 = vmatpush1.bf16.msra.mxu0 %v1696
        %1719 = vmatprep.subr.bf16.mxu0 0
        %1720 = vmatpush1.bf16.msra.mxu0 %v1695
        %1721 = vmatprep.subr.bf16.mxu0 0
        %1722 = vmatpush1.bf16.msra.mxu0 %v1694
        %1723 = vmatprep.subr.bf16.mxu0 0
        %1724 = vmatpush1.bf16.msra.mxu0 %v1693
        %1725 = vmatprep.subr.bf16.mxu0 0
        %1726 = vmatpush2.bf16.msra.mxu0 0
        %1727 = vmatprep.subr.bf16.mxu0 0
        %1728 = vmatpush2.bf16.msra.mxu0 0
        %1729 = vmatprep.subr.bf16.mxu0 0
        %1730 = vmatpush2.bf16.msra.mxu0 0
        %1731 = vmatprep.subr.bf16.mxu0 0
        %1732 = vmatpush2.bf16.msra.mxu0 0
        %1733 = vmatprep.subr.bf16.mxu0 0
        %1734 = vmatpush2.bf16.msra.mxu0 0
        %1735 = vmatprep.subr.bf16.mxu0 0
        %1736 = vmatpush2.bf16.msra.mxu0 0
        %1737 = vmatprep.subr.bf16.mxu0 0
        %1738 = vmatpush2.bf16.msra.mxu0 0
        %1739 = vmatprep.subr.bf16.mxu0 0
        %1740 = vmatpush2.bf16.msra.mxu0 0
        %1741 = vmatprep.mubr.bf16.mxu0 0
        %1742 = vmatmul.mubr.bf16.gmra.mxu0 %v1656
        %v1743 = vpop.f32.mrf.mxu0
        %v1744 = vadd.f32 %v1660, %v1743
        %v1745 = vpop.f32.mrf.mxu0
        %v1746 = vpop.f32.mrf.mxu0
        %v1747 = vadd.f32 %v1660, %v1746
        %v1748 = vpop.f32.mrf.mxu0
        %1749 = vdwg.mxu0
        %v1750 = vadd.f32 %v1588, %v1744
        %v1751 = vadd.f32 %v1589, %v1747
        %v1752 = vsel %vm497, %v1750, 0.0
        %1753 = vadd.xlane.f32.xlu0 %v1752
        %v1754 = vpop.xlane.xlu0 %1753
        %v1755 = vsel %vm497, %v1751, 0.0
        %1756 = vadd.xlane.f32.xlu0 %v1755
        %v1757 = vpop.xlane.xlu0 %1756
        %v1758 = vmul.f32 %v1754, %v1557
        %v1759 = vmul.f32 %v1757, %v1557
        %v1760 = vsub.f32 %v1750, %v1758
        %v1761 = vsub.f32 %v1751, %v1759
        %v1762 = vmul.f32 %v1760, %v1760
        %v1763 = vmul.f32 %v1761, %v1761
        %v1764 = vsel %vm497, %v1762, 0.0
        %1765 = vadd.xlane.f32.xlu0 %v1764
        %v1766 = vpop.xlane.xlu0 %1765
        %v1767 = vsel %vm497, %v1763, 0.0
        %1768 = vadd.xlane.f32.xlu0 %v1767
        %v1769 = vpop.xlane.xlu0 %1768
        %v1770 = vmul.f32 %v1766, %v1557
        %v1771 = vmul.f32 %v1769, %v1557
        %v1772 = vadd.f32 %v1770, 1e-05
        %v1773 = vadd.f32 %v1771, 1e-05
        %v1774 = vrsqrt.pop %v1772
        %v1775 = vrsqrt.pop %v1773
        %v1776 = vmul.f32 %v1760, %v1774
        %v1777 = vmul.f32 %v1761, %v1775
        %v1778 = vlaneseq
        %v1779 = vshrl.u32 %v1778, 7
        %v1780 = vsub.s32 4, %v1779
        %v1781 = vrot.slane %v476, %v1780
        %v1782 = vmul.f32 %v1776, %v1781
        %v1783 = vmul.f32 %v1777, %v1781
        %v1784 = vlaneseq
        %v1785 = vshrl.u32 %v1784, 7
        %v1786 = vsub.s32 5, %v1785
        %v1787 = vrot.slane %v476, %v1786
        %v1788 = vadd.f32 %v1782, %v1787
        %v1789 = vadd.f32 %v1783, %v1787
        %1790 = vst.msk [vmem:[#allocation2] sm:$0xff] %vm497, %v1788
        %1791 = vst.msk [vmem:[#allocation2 + $0x8] sm:$0xff] %vm497, %v1789
        %p1792 = scmp.eq.s32.totalorder %s25, 1
        // Predicated region
        $region57: #{tpu_custom_call.1} parent=51 // pred_check
          %p1793 = pneg %p1792
        $region58: #{tpu_custom_call.1} parent=51 // pred_check_branch
          %1795 = sbr.rel (%p1793) target = $region60
        $region59: #{tpu_custom_call.1} parent=51 // pred_region
          %v1798 = vrot.slane %v1789, 7
          %vm1801 = vcmask 261127
          %1802 = vst.msk [vmem:[#allocation4 - $0x7] sm:$0x80] %vm1801, %v1788
          %vm1803 = vcmask 253952
          %1804 = vst.msk [vmem:[#allocation4 + $0x1] sm:$0x1] %vm1803, %v1798
        $region60: #{tpu_custom_call.1} parent=51 // pred_fallthru
          _
        // Predicated region
        $region61: #{tpu_custom_call.1} parent=51 // pred_check
          %p1805 = pneg %p258
        $region62: #{tpu_custom_call.1} parent=51 // pred_check_branch
          %1807 = sbr.rel (%p1805) target = $region64
        $region63: #{tpu_custom_call.1} parent=51 // pred_region
          %s1809 = ssub.s32 32, 32
          %1810 = vsyncadd [#allocation5], %s1809
          %s1811 = smul.addr %s24, 32
          %s1812 = scalar_lea.hbm %s8, %s1811
          %s1814 = sshll.u32 [#allocation4], 4
          %s1815 = int_to_ptr.vmem [resolvable:$true] %s1814
          %1817 = dma.vmem_to_hbm [thread:$0]  %s1815, 32, %s1812, [#allocation5]
        $region64: #{tpu_custom_call.1} parent=51 // pred_fallthru
          _
        // Predicated region
        $region65: #{tpu_custom_call.1} parent=51 // pred_check
          %p1818 = pneg %p258
        $region66: #{tpu_custom_call.1} parent=51 // pred_check_branch
          %1820 = sbr.rel (%p1818) target = $region68
        $region67: #{tpu_custom_call.1} parent=51 // pred_region
          %1821 = dma.done [#allocation5], 32
        $region68: #{tpu_custom_call.1} parent=51 // pred_fallthru
          _
      $region52: #{tpu_custom_call.1} parent=5 // pred_fallthru
        _
      %p1822 = scmp.le.s32.totalorder 2, %s15
      // Predicated region
      $region69: #{tpu_custom_call.1} parent=5 // pred_check
        %p1823 = pneg %p1822
      $region70: #{tpu_custom_call.1} parent=5 // pred_check_branch
        %1825 = sbr.rel (%p1823) target = $region72
      $region71: #{tpu_custom_call.1} parent=5 // pred_region
        %s1826 = ssub.s32 %s15, 2
      $region72: #{tpu_custom_call.1} parent=5 // pred_fallthru
        _
    $region6: #{tpu_custom_call.1} parent=1 // loop_footer
      %s19 = sadd.s32 1, %s15
    $region7: #{tpu_custom_call.1} parent=1 // loop_footer_branch
      %14 = sbr.rel target = $region3
    $region8: #{tpu_custom_call.1} parent=1 // loop_exit
      _
    %1827 = vsyncpa [#allocation5], 1
    %s1828 = scalar_lea.sflag [#allocation5], 1
    %1829 = vsyncpa %s1828, 1

</llo_original>
